<compile_context>
chip_gen: v6e
topology: v6e:2x2x1
jax: 0.10.0
libtpu: 0.0.40
codegen_flags: <defaults>
</compile_context>

<pallas_src>
import jax
import jax.numpy as jnp
import numpy as np
from jax.experimental import pallas as pl
from jax.experimental.pallas import tpu as pltpu

KW_MAX = 5                      # widest branch kernel (k = 2..5)
BRANCH_WIDTHS = (2, 3, 4, 5)    # the four Conv2d width kernels
N_BRANCH = len(BRANCH_WIDTHS)


def make_inp_layer_kernel(C, H, W, KH, KW, oc, TB):
    HW = H * W
    L = TB * HW                       # lanes per grid step (batch folded in)
    ph0 = (KH - 1) // 2               # PyTorch 'same' left pad (height)
    pw0 = (KW - 1) // 2               # PyTorch 'same' left pad (width)

    def kernel(x_ref, w_ref, b_ref, m_ref, o_ref, patch_ref):
        # x_ref:     (C, L)        TB batch elements, spatial dims on lanes
        # w_ref:     (oc, K)       host-prepacked fused im2col weights, K=KH*KW*C
        # b_ref:     (oc, 1)
        # m_ref:     (KH*KW, L)    per-tap validity mask (grid-invariant, resident)
        # o_ref:     (oc, L)
        # patch_ref: (K, L)        im2col patch scratch (fully rewritten each step)
        x = x_ref[...]                                            # (C, L)

        # im2col via register-level lane rotations: tap (kh,kw) needs
        # x[c, p + (kh-ph0)*W + (kw-pw0)], i.e. a circular roll by -delta with
        # out-of-image positions zeroed by the precomputed mask.  Unmasked
        # positions never wrap across batch/image boundaries by construction.
        for kh in range(KH):
            for kw in range(KW):
                t = kh * KW + kw
                delta = (kh - ph0) * W + (kw - pw0)
                if delta == 0:
                    shifted = x
                else:
                    shifted = pltpu.roll(x, shift=(-delta) % L, axis=1)
                if kh != ph0 or kw != pw0:                        # centre tap: mask == 1
                    shifted = shifted * m_ref[t:t + 1, :]
                patch_ref[t * C:(t + 1) * C, :] = shifted

        # Single lane-dense MXU matmul covering all 4 conv branches at once.
        acc = jnp.dot(w_ref[...], patch_ref[...],
                      preferred_element_type=jnp.float32,
                      precision=jax.lax.Precision.HIGHEST)        # (oc, L)
        acc = jnp.maximum(acc + b_ref[...], 0.0)                  # bias + ReLU

        # F.normalize over channels (p=2, eps=1e-12): rsqrt of clamped sum-sq.
        ssq = jnp.sum(acc * acc, axis=0, keepdims=True)           # (1, L)
        o_ref[...] = acc * jax.lax.rsqrt(jnp.maximum(ssq, 1e-24))

    return kernel


def build_tap_masks(H, W, KH, KW, TB):
    """(KH*KW, TB*H*W) f32 validity mask for every (kh, kw) tap, tiled over TB."""
    HW = H * W
    ph0, pw0 = (KH - 1) // 2, (KW - 1) // 2
    hh = np.arange(HW) // W
    ww = np.arange(HW) % W
    m = np.zeros((KH * KW, TB * HW), np.float32)
    for kh in range(KH):
        for kw in range(KW):
            dh, dw = kh - ph0, kw - pw0
            valid = ((hh + dh >= 0) & (hh + dh < H) &
                     (ww + dw >= 0) & (ww + dw < W)).astype(np.float32)
            m[kh * KW + kw] = np.tile(valid, TB)
    return jnp.asarray(m)


def inp_layer_forward(x, w_packed, bias, in_dim, kmax=KW_MAX, target_lanes=1024):
    """Fused Inp_Layer_ forward: 4 'same' convs + ReLU + concat + L2 normalize."""
    N, C, H, W = x.shape
    oc, K = w_packed.shape
    KH, KW = in_dim, kmax
    assert K == KH * KW * C
    HW = H * W

    # Batch tile TB: widen the lane dim to >= target_lanes when possible, but
    # keep at least 2 grid steps (v7x megacore).  VMEM per step stays tiny
    # (few hundred KB) so the v7x 64 MiB limit is never a concern here.
    TB = max(1, min(N, max(1, target_lanes // HW)))
    if N // TB < 2 and N >= 2:
        TB = N // 2
    while TB > 1 and N % TB != 0:
        TB -= 1
    if HW % 128 != 0:
        TB = N                      # fall back: single full-array block (always legal)
    G = max(1, N // TB)
    L = TB * HW

    # (N, C, H, W) -> (C, N*HW): lane-major order is (n, h, w).  Free for C==1,
    # otherwise one small XLA transpose outside the kernel.
    xt = jnp.transpose(x.reshape(N, C, HW), (1, 0, 2)).reshape(C, N * HW)
    masks = build_tap_masks(H, W, KH, KW, TB)

    kernel = make_inp_layer_kernel(C, H, W, KH, KW, oc, TB)
    out = pl.pallas_call(
        kernel,
        out_shape=jax.ShapeDtypeStruct((oc, N * HW), jnp.float32),
        grid=(G,),
        in_specs=[
            pl.BlockSpec((C, L), lambda n: (0, n)),
            pl.BlockSpec((oc, K), lambda n: (0, 0)),       # resident
            pl.BlockSpec((oc, 1), lambda n: (0, 0)),       # resident
            pl.BlockSpec((KH * KW, L), lambda n: (0, 0)),  # resident
        ],
        out_specs=pl.BlockSpec((oc, L), lambda n: (0, n)),
        scratch_shapes=[pltpu.VMEM((K, L), jnp.float32)],
        compiler_params=pltpu.CompilerParams(dimension_semantics=("parallel",)),
    )(xt, w_packed, bias.reshape(oc, 1), masks)
    # (oc, N*HW) -> (N, oc, H, W)
    return jnp.transpose(out.reshape(oc, N, H, W), (1, 0, 2, 3))


def init_params(key, in_ch, out_ch, in_dim):
    """Kaiming-uniform-like init; returns fused/prepacked weights (oc, KH*KW*C)
    for the Pallas kernel plus raw per-branch weights for the JAX reference."""
    KH, KW = in_dim, KW_MAX
    oc = N_BRANCH * out_ch
    pw0 = (KW - 1) // 2
    w_emb = np.zeros((oc, KH, KW, in_ch), np.float32)   # (o, kh, kw, c)
    b_all = np.zeros((oc,), np.float32)
    branch_ws, branch_bs = [], []
    for bidx, k in enumerate(BRANCH_WIDTHS):
        key, kkw, kkb = jax.random.split(key, 3)
        fan_in = in_ch * KH * k
        bound = float(1.0 / np.sqrt(fan_in))
        wb = jax.random.uniform(kkw, (out_ch, in_ch, KH, k), jnp.float32, -bound, bound)
        bb = jax.random.uniform(kkb, (out_ch,), jnp.float32, -bound, bound)
        off = pw0 - (k - 1) // 2       # aligns PyTorch asymmetric 'same' padding
        o0 = bidx * out_ch
        w_np = np.transpose(np.asarray(wb), (0, 2, 3, 1))   # (out_ch, KH, k, in_ch)
        w_emb[o0:o0 + out_ch, :, off:off + k, :] = w_np
        b_all[o0:o0 + out_ch] = np.asarray(bb)
        branch_ws.append(wb)
        branch_bs.append(bb)
    w_packed = jnp.asarray(w_emb.reshape(oc, KH * KW * in_ch))
    return key, (w_packed, jnp.asarray(b_all)), (branch_ws, branch_bs)


def ref_inp_layer(x, branch_ws, branch_bs):
    """Pure-JAX reference mirroring the PyTorch Inp_Layer_ forward exactly."""
    outs = []
    for wb, bb in zip(branch_ws, branch_bs):
        kh, kw = wb.shape[2], wb.shape[3]
        ph = (kh - 1) // 2
        pw = (kw - 1) // 2
        y = jax.lax.conv_general_dilated(
            x, wb, window_strides=(1, 1),
            padding=[(ph, kh - 1 - ph), (pw, kw - 1 - pw)],
            dimension_numbers=("NCHW", "OIHW", "NCHW"),
            precision=jax.lax.Precision.HIGHEST)
        outs.append(jnp.maximum(y + bb.reshape(1, -1, 1, 1), 0.0))
    cat = jnp.concatenate(outs, axis=1)
    norm = jnp.sqrt(jnp.sum(cat * cat, axis=1, keepdims=True))
    return cat / jnp.maximum(norm, 1e-12)


if __name__ == "__main__":
    key = jax.random.PRNGKey(0)
    key, kx = jax.random.split(key)
    N, C, H, W = 8, 1, 4, 32            # NCHW input; H = in_dim = 4, W = sequence
    in_dim, out_ch = 4, 3
    x = jax.random.normal(kx, (N, C, H, W), jnp.float32)

    key, (w_packed, bias), (branch_ws, branch_bs) = init_params(key, C, out_ch, in_dim)

    out = jax.block_until_ready(inp_layer_forward(x, w_packed, bias, in_dim))
    assert out.shape == (N, N_BRANCH * out_ch, H, W), out.shape

    ref = ref_inp_layer(x, branch_ws, branch_bs)
    err = float(jnp.max(jnp.abs(out - ref)))
    assert err < 1e-4, f"mismatch vs reference, max abs err {err}"

    print("KERNEL_OK")
</pallas_src>

<mosaic_0001>
module attributes {stable_mosaic.version = 11 : i64} {
  func.func @kernel(%arg0: i32, %arg1: memref<1x512xf32, #tpu.memory_space<vmem>>, %arg2: memref<12x20xf32, #tpu.memory_space<vmem>>, %arg3: memref<12x1xf32, #tpu.memory_space<vmem>>, %arg4: memref<20x512xf32, #tpu.memory_space<vmem>>, %arg5: memref<12x512xf32, #tpu.memory_space<vmem>>, %arg6: memref<20x512xf32, #tpu.memory_space<vmem>>) attributes {dimension_semantics = [#tpu.dimension_semantics<parallel>], iteration_bounds = array<i64: 2>, scalar_prefetch = 0 : i64, scratch_operands = 1 : i64, tpu.core_type = #tpu.core_type<tc>, window_params = [{transform_indices = @transform_0, window_bounds = array<i64: 1, 512>}, {pipeline_mode = #tpu.pipeline_mode<synchronous>, transform_indices = @transform_1, window_bounds = array<i64: 12, 20>}, {pipeline_mode = #tpu.pipeline_mode<synchronous>, transform_indices = @transform_2, window_bounds = array<i64: 12, 1>}, {pipeline_mode = #tpu.pipeline_mode<synchronous>, transform_indices = @transform_3, window_bounds = array<i64: 20, 512>}, {transform_indices = @transform_4, window_bounds = array<i64: 12, 512>}]} {
    %c0 = arith.constant 0 : index
    %c0_0 = arith.constant 0 : index
    %0 = vector.load %arg1[%c0, %c0_0] : memref<1x512xf32, #tpu.memory_space<vmem>>, vector<1x512xf32>
    %c34_i32 = arith.constant 34 : i32
    %1 = tpu.dynamic_rotate %0 by %c34_i32 dim 1 : vector<1x512xf32>, i32 -> vector<1x512xf32>
    %c0_1 = arith.constant 0 : index
    %c0_2 = arith.constant 0 : index
    %2 = vector.load %arg4[%c0_1, %c0_2] : memref<20x512xf32, #tpu.memory_space<vmem>>, vector<1x512xf32>
    %3 = arith.mulf %1, %2 : vector<1x512xf32>
    %c0_3 = arith.constant 0 : index
    %c0_4 = arith.constant 0 : index
    %4 = vector.load %arg6[%c0_3, %c0_4] : memref<20x512xf32, #tpu.memory_space<vmem>>, vector<1x512xf32>
    tpu.vector_store %arg6[%c0_3, %c0_4], %3 {strides = array<i32>} : memref<20x512xf32, #tpu.memory_space<vmem>>, vector<1x512xf32>,
    %c33_i32 = arith.constant 33 : i32
    %5 = tpu.dynamic_rotate %0 by %c33_i32 dim 1 : vector<1x512xf32>, i32 -> vector<1x512xf32>
    %c1 = arith.constant 1 : index
    %c0_5 = arith.constant 0 : index
    %6 = vector.load %arg4[%c1, %c0_5] : memref<20x512xf32, #tpu.memory_space<vmem>>, vector<1x512xf32>
    %7 = arith.mulf %5, %6 : vector<1x512xf32>
    %c1_6 = arith.constant 1 : index
    %c0_7 = arith.constant 0 : index
    %8 = vector.load %arg6[%c1_6, %c0_7] : memref<20x512xf32, #tpu.memory_space<vmem>>, vector<1x512xf32>
    tpu.vector_store %arg6[%c1_6, %c0_7], %7 {strides = array<i32>} : memref<20x512xf32, #tpu.memory_space<vmem>>, vector<1x512xf32>,
    %c32_i32 = arith.constant 32 : i32
    %9 = tpu.dynamic_rotate %0 by %c32_i32 dim 1 : vector<1x512xf32>, i32 -> vector<1x512xf32>
    %c2 = arith.constant 2 : index
    %c0_8 = arith.constant 0 : index
    %10 = vector.load %arg4[%c2, %c0_8] : memref<20x512xf32, #tpu.memory_space<vmem>>, vector<1x512xf32>
    %11 = arith.mulf %9, %10 : vector<1x512xf32>
    %c2_9 = arith.constant 2 : index
    %c0_10 = arith.constant 0 : index
    %12 = vector.load %arg6[%c2_9, %c0_10] : memref<20x512xf32, #tpu.memory_space<vmem>>, vector<1x512xf32>
    tpu.vector_store %arg6[%c2_9, %c0_10], %11 {strides = array<i32>} : memref<20x512xf32, #tpu.memory_space<vmem>>, vector<1x512xf32>,
    %c31_i32 = arith.constant 31 : i32
    %13 = tpu.dynamic_rotate %0 by %c31_i32 dim 1 : vector<1x512xf32>, i32 -> vector<1x512xf32>
    %c3 = arith.constant 3 : index
    %c0_11 = arith.constant 0 : index
    %14 = vector.load %arg4[%c3, %c0_11] : memref<20x512xf32, #tpu.memory_space<vmem>>, vector<1x512xf32>
    %15 = arith.mulf %13, %14 : vector<1x512xf32>
    %c3_12 = arith.constant 3 : index
    %c0_13 = arith.constant 0 : index
    %16 = vector.load %arg6[%c3_12, %c0_13] : memref<20x512xf32, #tpu.memory_space<vmem>>, vector<1x512xf32>
    tpu.vector_store %arg6[%c3_12, %c0_13], %15 {strides = array<i32>} : memref<20x512xf32, #tpu.memory_space<vmem>>, vector<1x512xf32>,
    %c30_i32 = arith.constant 30 : i32
    %17 = tpu.dynamic_rotate %0 by %c30_i32 dim 1 : vector<1x512xf32>, i32 -> vector<1x512xf32>
    %c4 = arith.constant 4 : index
    %c0_14 = arith.constant 0 : index
    %18 = vector.load %arg4[%c4, %c0_14] : memref<20x512xf32, #tpu.memory_space<vmem>>, vector<1x512xf32>
    %19 = arith.mulf %17, %18 : vector<1x512xf32>
    %c4_15 = arith.constant 4 : index
    %c0_16 = arith.constant 0 : index
    %20 = vector.load %arg6[%c4_15, %c0_16] : memref<20x512xf32, #tpu.memory_space<vmem>>, vector<1x512xf32>
    tpu.vector_store %arg6[%c4_15, %c0_16], %19 {strides = array<i32>} : memref<20x512xf32, #tpu.memory_space<vmem>>, vector<1x512xf32>,
    %c2_i32 = arith.constant 2 : i32
    %21 = tpu.dynamic_rotate %0 by %c2_i32 dim 1 : vector<1x512xf32>, i32 -> vector<1x512xf32>
    %c5 = arith.constant 5 : index
    %c0_17 = arith.constant 0 : index
    %22 = vector.load %arg4[%c5, %c0_17] : memref<20x512xf32, #tpu.memory_space<vmem>>, vector<1x512xf32>
    %23 = arith.mulf %21, %22 : vector<1x512xf32>
    %c5_18 = arith.constant 5 : index
    %c0_19 = arith.constant 0 : index
    %24 = vector.load %arg6[%c5_18, %c0_19] : memref<20x512xf32, #tpu.memory_space<vmem>>, vector<1x512xf32>
    tpu.vector_store %arg6[%c5_18, %c0_19], %23 {strides = array<i32>} : memref<20x512xf32, #tpu.memory_space<vmem>>, vector<1x512xf32>,
    %c1_i32 = arith.constant 1 : i32
    %25 = tpu.dynamic_rotate %0 by %c1_i32 dim 1 : vector<1x512xf32>, i32 -> vector<1x512xf32>
    %c6 = arith.constant 6 : index
    %c0_20 = arith.constant 0 : index
    %26 = vector.load %arg4[%c6, %c0_20] : memref<20x512xf32, #tpu.memory_space<vmem>>, vector<1x512xf32>
    %27 = arith.mulf %25, %26 : vector<1x512xf32>
    %c6_21 = arith.constant 6 : index
    %c0_22 = arith.constant 0 : index
    %28 = vector.load %arg6[%c6_21, %c0_22] : memref<20x512xf32, #tpu.memory_space<vmem>>, vector<1x512xf32>
    tpu.vector_store %arg6[%c6_21, %c0_22], %27 {strides = array<i32>} : memref<20x512xf32, #tpu.memory_space<vmem>>, vector<1x512xf32>,
    %c7 = arith.constant 7 : index
    %c0_23 = arith.constant 0 : index
    %29 = vector.load %arg6[%c7, %c0_23] : memref<20x512xf32, #tpu.memory_space<vmem>>, vector<1x512xf32>
    tpu.vector_store %arg6[%c7, %c0_23], %0 {strides = array<i32>} : memref<20x512xf32, #tpu.memory_space<vmem>>, vector<1x512xf32>,
    %c511_i32 = arith.constant 511 : i32
    %30 = tpu.dynamic_rotate %0 by %c511_i32 dim 1 : vector<1x512xf32>, i32 -> vector<1x512xf32>
    %c8 = arith.constant 8 : index
    %c0_24 = arith.constant 0 : index
    %31 = vector.load %arg4[%c8, %c0_24] : memref<20x512xf32, #tpu.memory_space<vmem>>, vector<1x512xf32>
    %32 = arith.mulf %30, %31 : vector<1x512xf32>
    %c8_25 = arith.constant 8 : index
    %c0_26 = arith.constant 0 : index
    %33 = vector.load %arg6[%c8_25, %c0_26] : memref<20x512xf32, #tpu.memory_space<vmem>>, vector<1x512xf32>
    tpu.vector_store %arg6[%c8_25, %c0_26], %32 {strides = array<i32>} : memref<20x512xf32, #tpu.memory_space<vmem>>, vector<1x512xf32>,
    %c510_i32 = arith.constant 510 : i32
    %34 = tpu.dynamic_rotate %0 by %c510_i32 dim 1 : vector<1x512xf32>, i32 -> vector<1x512xf32>
    %c9 = arith.constant 9 : index
    %c0_27 = arith.constant 0 : index
    %35 = vector.load %arg4[%c9, %c0_27] : memref<20x512xf32, #tpu.memory_space<vmem>>, vector<1x512xf32>
    %36 = arith.mulf %34, %35 : vector<1x512xf32>
    %c9_28 = arith.constant 9 : index
    %c0_29 = arith.constant 0 : index
    %37 = vector.load %arg6[%c9_28, %c0_29] : memref<20x512xf32, #tpu.memory_space<vmem>>, vector<1x512xf32>
    tpu.vector_store %arg6[%c9_28, %c0_29], %36 {strides = array<i32>} : memref<20x512xf32, #tpu.memory_space<vmem>>, vector<1x512xf32>,
    %c482_i32 = arith.constant 482 : i32
    %38 = tpu.dynamic_rotate %0 by %c482_i32 dim 1 : vector<1x512xf32>, i32 -> vector<1x512xf32>
    %c10 = arith.constant 10 : index
    %c0_30 = arith.constant 0 : index
    %39 = vector.load %arg4[%c10, %c0_30] : memref<20x512xf32, #tpu.memory_space<vmem>>, vector<1x512xf32>
    %40 = arith.mulf %38, %39 : vector<1x512xf32>
    %c10_31 = arith.constant 10 : index
    %c0_32 = arith.constant 0 : index
    %41 = vector.load %arg6[%c10_31, %c0_32] : memref<20x512xf32, #tpu.memory_space<vmem>>, vector<1x512xf32>
    tpu.vector_store %arg6[%c10_31, %c0_32], %40 {strides = array<i32>} : memref<20x512xf32, #tpu.memory_space<vmem>>, vector<1x512xf32>,
    %c481_i32 = arith.constant 481 : i32
    %42 = tpu.dynamic_rotate %0 by %c481_i32 dim 1 : vector<1x512xf32>, i32 -> vector<1x512xf32>
    %c11 = arith.constant 11 : index
    %c0_33 = arith.constant 0 : index
    %43 = vector.load %arg4[%c11, %c0_33] : memref<20x512xf32, #tpu.memory_space<vmem>>, vector<1x512xf32>
    %44 = arith.mulf %42, %43 : vector<1x512xf32>
    %c11_34 = arith.constant 11 : index
    %c0_35 = arith.constant 0 : index
    %45 = vector.load %arg6[%c11_34, %c0_35] : memref<20x512xf32, #tpu.memory_space<vmem>>, vector<1x512xf32>
    tpu.vector_store %arg6[%c11_34, %c0_35], %44 {strides = array<i32>} : memref<20x512xf32, #tpu.memory_space<vmem>>, vector<1x512xf32>,
    %c480_i32 = arith.constant 480 : i32
    %46 = tpu.dynamic_rotate %0 by %c480_i32 dim 1 : vector<1x512xf32>, i32 -> vector<1x512xf32>
    %c12 = arith.constant 12 : index
    %c0_36 = arith.constant 0 : index
    %47 = vector.load %arg4[%c12, %c0_36] : memref<20x512xf32, #tpu.memory_space<vmem>>, vector<1x512xf32>
    %48 = arith.mulf %46, %47 : vector<1x512xf32>
    %c12_37 = arith.constant 12 : index
    %c0_38 = arith.constant 0 : index
    %49 = vector.load %arg6[%c12_37, %c0_38] : memref<20x512xf32, #tpu.memory_space<vmem>>, vector<1x512xf32>
    tpu.vector_store %arg6[%c12_37, %c0_38], %48 {strides = array<i32>} : memref<20x512xf32, #tpu.memory_space<vmem>>, vector<1x512xf32>,
    %c479_i32 = arith.constant 479 : i32
    %50 = tpu.dynamic_rotate %0 by %c479_i32 dim 1 : vector<1x512xf32>, i32 -> vector<1x512xf32>
    %c13 = arith.constant 13 : index
    %c0_39 = arith.constant 0 : index
    %51 = vector.load %arg4[%c13, %c0_39] : memref<20x512xf32, #tpu.memory_space<vmem>>, vector<1x512xf32>
    %52 = arith.mulf %50, %51 : vector<1x512xf32>
    %c13_40 = arith.constant 13 : index
    %c0_41 = arith.constant 0 : index
    %53 = vector.load %arg6[%c13_40, %c0_41] : memref<20x512xf32, #tpu.memory_space<vmem>>, vector<1x512xf32>
    tpu.vector_store %arg6[%c13_40, %c0_41], %52 {strides = array<i32>} : memref<20x512xf32, #tpu.memory_space<vmem>>, vector<1x512xf32>,
    %c478_i32 = arith.constant 478 : i32
    %54 = tpu.dynamic_rotate %0 by %c478_i32 dim 1 : vector<1x512xf32>, i32 -> vector<1x512xf32>
    %c14 = arith.constant 14 : index
    %c0_42 = arith.constant 0 : index
    %55 = vector.load %arg4[%c14, %c0_42] : memref<20x512xf32, #tpu.memory_space<vmem>>, vector<1x512xf32>
    %56 = arith.mulf %54, %55 : vector<1x512xf32>
    %c14_43 = arith.constant 14 : index
    %c0_44 = arith.constant 0 : index
    %57 = vector.load %arg6[%c14_43, %c0_44] : memref<20x512xf32, #tpu.memory_space<vmem>>, vector<1x512xf32>
    tpu.vector_store %arg6[%c14_43, %c0_44], %56 {strides = array<i32>} : memref<20x512xf32, #tpu.memory_space<vmem>>, vector<1x512xf32>,
    %c450_i32 = arith.constant 450 : i32
    %58 = tpu.dynamic_rotate %0 by %c450_i32 dim 1 : vector<1x512xf32>, i32 -> vector<1x512xf32>
    %c15 = arith.constant 15 : index
    %c0_45 = arith.constant 0 : index
    %59 = vector.load %arg4[%c15, %c0_45] : memref<20x512xf32, #tpu.memory_space<vmem>>, vector<1x512xf32>
    %60 = arith.mulf %58, %59 : vector<1x512xf32>
    %c15_46 = arith.constant 15 : index
    %c0_47 = arith.constant 0 : index
    %61 = vector.load %arg6[%c15_46, %c0_47] : memref<20x512xf32, #tpu.memory_space<vmem>>, vector<1x512xf32>
    tpu.vector_store %arg6[%c15_46, %c0_47], %60 {strides = array<i32>} : memref<20x512xf32, #tpu.memory_space<vmem>>, vector<1x512xf32>,
    %c449_i32 = arith.constant 449 : i32
    %62 = tpu.dynamic_rotate %0 by %c449_i32 dim 1 : vector<1x512xf32>, i32 -> vector<1x512xf32>
    %c16 = arith.constant 16 : index
    %c0_48 = arith.constant 0 : index
    %63 = vector.load %arg4[%c16, %c0_48] : memref<20x512xf32, #tpu.memory_space<vmem>>, vector<1x512xf32>
    %64 = arith.mulf %62, %63 : vector<1x512xf32>
    %c16_49 = arith.constant 16 : index
    %c0_50 = arith.constant 0 : index
    %65 = vector.load %arg6[%c16_49, %c0_50] : memref<20x512xf32, #tpu.memory_space<vmem>>, vector<1x512xf32>
    tpu.vector_store %arg6[%c16_49, %c0_50], %64 {strides = array<i32>} : memref<20x512xf32, #tpu.memory_space<vmem>>, vector<1x512xf32>,
    %c448_i32 = arith.constant 448 : i32
    %66 = tpu.dynamic_rotate %0 by %c448_i32 dim 1 : vector<1x512xf32>, i32 -> vector<1x512xf32>
    %c17 = arith.constant 17 : index
    %c0_51 = arith.constant 0 : index
    %67 = vector.load %arg4[%c17, %c0_51] : memref<20x512xf32, #tpu.memory_space<vmem>>, vector<1x512xf32>
    %68 = arith.mulf %66, %67 : vector<1x512xf32>
    %c17_52 = arith.constant 17 : index
    %c0_53 = arith.constant 0 : index
    %69 = vector.load %arg6[%c17_52, %c0_53] : memref<20x512xf32, #tpu.memory_space<vmem>>, vector<1x512xf32>
    tpu.vector_store %arg6[%c17_52, %c0_53], %68 {strides = array<i32>} : memref<20x512xf32, #tpu.memory_space<vmem>>, vector<1x512xf32>,
    %c447_i32 = arith.constant 447 : i32
    %70 = tpu.dynamic_rotate %0 by %c447_i32 dim 1 : vector<1x512xf32>, i32 -> vector<1x512xf32>
    %c18 = arith.constant 18 : index
    %c0_54 = arith.constant 0 : index
    %71 = vector.load %arg4[%c18, %c0_54] : memref<20x512xf32, #tpu.memory_space<vmem>>, vector<1x512xf32>
    %72 = arith.mulf %70, %71 : vector<1x512xf32>
    %c18_55 = arith.constant 18 : index
    %c0_56 = arith.constant 0 : index
    %73 = vector.load %arg6[%c18_55, %c0_56] : memref<20x512xf32, #tpu.memory_space<vmem>>, vector<1x512xf32>
    tpu.vector_store %arg6[%c18_55, %c0_56], %72 {strides = array<i32>} : memref<20x512xf32, #tpu.memory_space<vmem>>, vector<1x512xf32>,
    %c446_i32 = arith.constant 446 : i32
    %74 = tpu.dynamic_rotate %0 by %c446_i32 dim 1 : vector<1x512xf32>, i32 -> vector<1x512xf32>
    %c19 = arith.constant 19 : index
    %c0_57 = arith.constant 0 : index
    %75 = vector.load %arg4[%c19, %c0_57] : memref<20x512xf32, #tpu.memory_space<vmem>>, vector<1x512xf32>
    %76 = arith.mulf %74, %75 : vector<1x512xf32>
    %c19_58 = arith.constant 19 : index
    %c0_59 = arith.constant 0 : index
    %77 = vector.load %arg6[%c19_58, %c0_59] : memref<20x512xf32, #tpu.memory_space<vmem>>, vector<1x512xf32>
    tpu.vector_store %arg6[%c19_58, %c0_59], %76 {strides = array<i32>} : memref<20x512xf32, #tpu.memory_space<vmem>>, vector<1x512xf32>,
    %c0_60 = arith.constant 0 : index
    %c0_61 = arith.constant 0 : index
    %78 = vector.load %arg2[%c0_60, %c0_61] : memref<12x20xf32, #tpu.memory_space<vmem>>, vector<12x20xf32>
    %c0_62 = arith.constant 0 : index
    %c0_63 = arith.constant 0 : index
    %79 = vector.load %arg6[%c0_62, %c0_63] : memref<20x512xf32, #tpu.memory_space<vmem>>, vector<20x512xf32>
    %cst = arith.constant dense<0.000000e+00> : vector<12x512xf32>
    %80 = tpu.matmul %78, %79, %cst {dimension_numbers = #tpu.dot_dimension_numbers<[1], [0], [0], [1], [0, 0, 1, 1], [], []>, precision = #tpu.contract_precision<fp32>} : vector<12x20xf32>, vector<20x512xf32>, vector<12x512xf32> -> vector<12x512xf32>
    %c0_64 = arith.constant 0 : index
    %c0_65 = arith.constant 0 : index
    %81 = vector.load %arg3[%c0_64, %c0_65] : memref<12x1xf32, #tpu.memory_space<vmem>>, vector<12x1xf32>
    %82 = vector.broadcast %81 : vector<12x1xf32> to vector<12x512xf32>
    %83 = arith.addf %80, %82 : vector<12x512xf32>
    %cst_66 = arith.constant 0.000000e+00 : f32
    %84 = vector.broadcast %cst_66 : f32 to vector<12x512xf32>
    %85 = arith.maximumf %83, %84 : vector<12x512xf32>
    %86 = arith.mulf %85, %85 : vector<12x512xf32>
    %cst_67 = arith.constant dense<0.000000e+00> : vector<512xf32>
    %87 = vector.multi_reduction <add>, %86, %cst_67 [0] : vector<12x512xf32> to vector<512xf32>
    %88 = vector.shape_cast %87 : vector<512xf32> to vector<1x512xf32>
    %cst_68 = arith.constant 1.000000e-24 : f32
    %89 = vector.broadcast %cst_68 : f32 to vector<1x512xf32>
    %90 = arith.maximumf %88, %89 : vector<1x512xf32>
    %91 = math.rsqrt %90 : vector<1x512xf32>
    %92 = vector.broadcast %91 : vector<1x512xf32> to vector<12x512xf32>
    %93 = arith.mulf %85, %92 : vector<12x512xf32>
    %c0_69 = arith.constant 0 : index
    %c0_70 = arith.constant 0 : index
    %94 = vector.load %arg5[%c0_69, %c0_70] : memref<12x512xf32, #tpu.memory_space<vmem>>, vector<12x512xf32>
    tpu.vector_store %arg5[%c0_69, %c0_70], %93 {strides = array<i32>} : memref<12x512xf32, #tpu.memory_space<vmem>>, vector<12x512xf32>,
    return
  }
  func.func @transform_0(%arg0: i32) -> (i32, i32) {
    %c0_i32 = arith.constant 0 : i32
    %c0_i32_0 = arith.constant 0 : i32
    return %c0_i32, %arg0 : i32, i32
  }
  func.func @transform_1(%arg0: i32) -> (i32, i32) {
    %c0_i32 = arith.constant 0 : i32
    %c0_i32_0 = arith.constant 0 : i32
    %c0_i32_1 = arith.constant 0 : i32
    return %c0_i32, %c0_i32_0 : i32, i32
  }
  func.func @transform_2(%arg0: i32) -> (i32, i32) {
    %c0_i32 = arith.constant 0 : i32
    %c0_i32_0 = arith.constant 0 : i32
    %c0_i32_1 = arith.constant 0 : i32
    return %c0_i32, %c0_i32_0 : i32, i32
  }
  func.func @transform_3(%arg0: i32) -> (i32, i32) {
    %c0_i32 = arith.constant 0 : i32
    %c0_i32_0 = arith.constant 0 : i32
    %c0_i32_1 = arith.constant 0 : i32
    return %c0_i32, %c0_i32_0 : i32, i32
  }
  func.func @transform_4(%arg0: i32) -> (i32, i32) {
    %c0_i32 = arith.constant 0 : i32
    %c0_i32_0 = arith.constant 0 : i32
    return %c0_i32, %arg0 : i32, i32
  }
}

</mosaic_0001>

<llo_original>
// kernel: tpu_custom_call.1
$region0: #{tpu_custom_call.1}
  #allocation0 [shape = 'u32[]', space=smem, size = 0x4, offset = 0x4, fixed_abs, tag = 'smem constant byte address 0x4 - core index']
  #allocation1 [shape = 'u32[144,128]{1,0:T(1,128)}', space=vmem, size = 0x12000, scoped, tag = 'internal scratch']
  #allocation2 [shape = 'f32[20,512]{1,0:T(8,128)}', space=vmem, size = 0xc000, scoped, tag = 'scratch operand']
  %s0 = inlined_call_operand.hbm [shape: f32[1,1024], index: 0, kind: input, shape index: {}]
  %s1 = inlined_call_operand.vmem [shape: f32[12,20], index: 1, kind: input, shape index: {}]
  %s2 = inlined_call_operand.vmem [shape: f32[12,1], index: 2, kind: input, shape index: {}]
  %s3 = inlined_call_operand.hbm [shape: f32[20,512], index: 3, kind: input, shape index: {}]
  %s4 = inlined_call_operand.hbm [shape: f32[12,1024], index: 4, kind: output, shape index: {}]
  %s5 = sld [smem:[#allocation0]]
  $region57: #{tpu_custom_call.1} parent=0
    _
  %s7 = ssub.s32 1, %s5
  %s8 = scalar_select 0, %s7, %s5
  $region1: #{tpu_custom_call.1} parent=0
    #allocation3 [shape = 'u8[4096]{0}', space=vmem, size = 0x1000, scoped, tag = 'input window, operand 0']
    #allocation4 [shape = 's32[2]{0}', space=sflag, size = 0x8, scoped, tag = 'scoped memory for tpu_custom_call.1']
    #allocation5 [shape = 's32[2]{0}', space=sflag, size = 0x8, scoped, tag = 'scoped memory for tpu_custom_call.1']
    #allocation6 [shape = 'u8[49152]{0}', space=vmem, size = 0xc000, scoped, tag = 'input window, operand 3, single buffered']
    #allocation7 [shape = 's32[1]{0}', space=sflag, size = 0x4, scoped, tag = 'scoped memory for tpu_custom_call.1']
    #allocation8 [shape = 'u8[65536]{0}', space=vmem, size = 0x10000, scoped, tag = 'output window, operand 0']
    %9 = vsyncpa [#allocation4], 0
    %s10 = scalar_lea.sflag [#allocation4], 1
    %11 = vsyncpa %s10, 0
    %12 = vsyncpa [#allocation7], 0
    %13 = vsyncpa [#allocation5], 0
    %s14 = scalar_lea.sflag [#allocation5], 1
    %15 = vsyncpa %s14, 0
    loop: start=0, step=1, limit=4
    $region2: #{tpu_custom_call.1} parent=1 // loop_pre_header
      _
    $region3: #{tpu_custom_call.1} parent=1 // loop_header
      %s17 = sphi 0, %s21
      %p18 = scmp.ge.s32.totalorder %s17, 4
      %s27 = sphi 0, %s29
      %s30 = sphi 0, %s27
      %s31 = sphi 0, %s30
      %s47 = sphi 0, %s31
      %s51 = sphi 0, %s51
      %s53 = sphi 0, %s51
      %s54 = sphi 0, %s53
      %s68 = sphi 0, %s54
      %s72 = sphi 0, %s72
      %s74 = sphi 0, %s72
      %s75 = sphi 0, %s74
      %s89 = sphi 0, %s75
      %s93 = sphi 0, %s93
      %s95 = sphi 0, %s93
      %s96 = sphi 0, %s95
      %s110 = sphi 0, %s96
      %s116 = sphi 0, %s118
      %s119 = sphi 0, %s116
      %s120 = sphi 0, %s119
      %s136 = sphi 0, %s120
    $region4: #{tpu_custom_call.1} parent=1 // loop_header_branch
      %20 = sbr.rel (%p18) target = $region8
    $region5: #{tpu_custom_call.1} parent=1 // loop_body
      %s22 = ssub.s32 %s17, 1
      %s23 = ssub.s32 %s17, 2
      %s24 = sadd.s32 %s17, 1
      %s25 = ssub.s32 %s17, %s24
      %p26 = scmp.eq.s32.totalorder %s25, 0
      %s28 = sadd.s32 %s27, 1
      %s29 = scalar_select %p26, %s27, %s28
      %p32 = pneg %p26
      %p33 = scmp.eq.s32.totalorder %s17, 1
      %p34 = por %p32, %p33
      %p35 = scmp.ne.s32.totalorder %s27, %s30
      %p36 = scmp.eq.s32.totalorder %s17, 0
      %p37 = por %p35, %p36
      %p38 = scmp.ne.s32.totalorder %s27, %s30
      %p39 = scmp.eq.s32.totalorder %s22, 1
      %p40 = por %p38, %p39
      %p41 = scmp.ne.s32.totalorder %s30, %s31
      %p42 = scmp.eq.s32.totalorder %s22, 0
      %p43 = por %p41, %p42
      %p44 = scmp.ne.s32.totalorder %s30, %s31
      %p45 = scmp.eq.s32.totalorder %s23, 1
      %p46 = por %p44, %p45
      %p48 = scmp.ne.s32.totalorder %s31, %s47
      %p49 = scmp.eq.s32.totalorder %s23, 0
      %p50 = por %p48, %p49
      %s52 = sadd.s32 %s51, 1
      %p55 = scmp.eq.s32.totalorder %s17, 1
      %p56 = scmp.ne.s32.totalorder %s51, %s53
      %p57 = scmp.eq.s32.totalorder %s17, 0
      %p58 = por %p56, %p57
      %p59 = scmp.ne.s32.totalorder %s51, %s53
      %p60 = scmp.eq.s32.totalorder %s22, 1
      %p61 = por %p59, %p60
      %p62 = scmp.ne.s32.totalorder %s53, %s54
      %p63 = scmp.eq.s32.totalorder %s22, 0
      %p64 = por %p62, %p63
      %p65 = scmp.ne.s32.totalorder %s53, %s54
      %p66 = scmp.eq.s32.totalorder %s23, 1
      %p67 = por %p65, %p66
      %p69 = scmp.ne.s32.totalorder %s54, %s68
      %p70 = scmp.eq.s32.totalorder %s23, 0
      %p71 = por %p69, %p70
      %s73 = sadd.s32 %s72, 1
      %p76 = scmp.eq.s32.totalorder %s17, 1
      %p77 = scmp.ne.s32.totalorder %s72, %s74
      %p78 = scmp.eq.s32.totalorder %s17, 0
      %p79 = por %p77, %p78
      %p80 = scmp.ne.s32.totalorder %s72, %s74
      %p81 = scmp.eq.s32.totalorder %s22, 1
      %p82 = por %p80, %p81
      %p83 = scmp.ne.s32.totalorder %s74, %s75
      %p84 = scmp.eq.s32.totalorder %s22, 0
      %p85 = por %p83, %p84
      %p86 = scmp.ne.s32.totalorder %s74, %s75
      %p87 = scmp.eq.s32.totalorder %s23, 1
      %p88 = por %p86, %p87
      %p90 = scmp.ne.s32.totalorder %s75, %s89
      %p91 = scmp.eq.s32.totalorder %s23, 0
      %p92 = por %p90, %p91
      %s94 = sadd.s32 %s93, 1
      %p97 = scmp.eq.s32.totalorder %s17, 1
      %p98 = scmp.ne.s32.totalorder %s93, %s95
      %p99 = scmp.eq.s32.totalorder %s17, 0
      %p100 = por %p98, %p99
      %p101 = scmp.ne.s32.totalorder %s93, %s95
      %p102 = scmp.eq.s32.totalorder %s22, 1
      %p103 = por %p101, %p102
      %p104 = scmp.ne.s32.totalorder %s95, %s96
      %p105 = scmp.eq.s32.totalorder %s22, 0
      %p106 = por %p104, %p105
      %p107 = scmp.ne.s32.totalorder %s95, %s96
      %p108 = scmp.eq.s32.totalorder %s23, 1
      %p109 = por %p107, %p108
      %p111 = scmp.ne.s32.totalorder %s96, %s110
      %p112 = scmp.eq.s32.totalorder %s23, 0
      %p113 = por %p111, %p112
      %s114 = ssub.s32 %s17, %s24
      %p115 = scmp.eq.s32.totalorder %s114, 0
      %s117 = sadd.s32 %s116, 1
      %s118 = scalar_select %p115, %s116, %s117
      %p121 = pneg %p115
      %p122 = scmp.eq.s32.totalorder %s17, 1
      %p123 = por %p121, %p122
      %p124 = scmp.ne.s32.totalorder %s116, %s119
      %p125 = scmp.eq.s32.totalorder %s17, 0
      %p126 = por %p124, %p125
      %p127 = scmp.ne.s32.totalorder %s116, %s119
      %p128 = scmp.eq.s32.totalorder %s22, 1
      %p129 = por %p127, %p128
      %p130 = scmp.ne.s32.totalorder %s119, %s120
      %p131 = scmp.eq.s32.totalorder %s22, 0
      %p132 = por %p130, %p131
      %p133 = scmp.ne.s32.totalorder %s119, %s120
      %p134 = scmp.eq.s32.totalorder %s23, 1
      %p135 = por %p133, %p134
      %p137 = scmp.ne.s32.totalorder %s120, %s136
      %p138 = scmp.eq.s32.totalorder %s23, 0
      %p139 = por %p137, %p138
      %p140 = scmp.le.s32.totalorder 1, %s17
      %p141 = scmp.lt.s32.totalorder %s17, 3
      %p142 = pnand %p140, %p141
      %p143 = pneg %p142
      // Predicated region
      $region9: #{tpu_custom_call.1} parent=5 // pred_check
        _
      $region10: #{tpu_custom_call.1} parent=5 // pred_check_branch
        %145 = sbr.rel (%p142) target = $region12
      $region11: #{tpu_custom_call.1} parent=5 // pred_region
        %s146 = ssub.s32 %s17, 1
        // Predicated region
        $region13: #{tpu_custom_call.1} parent=11 // pred_check
          %p147 = pneg %p64
        $region14: #{tpu_custom_call.1} parent=11 // pred_check_branch
          %149 = sbr.rel (%p147) target = $region16
        $region15: #{tpu_custom_call.1} parent=11 // pred_region
          _
        $region16: #{tpu_custom_call.1} parent=11 // pred_fallthru
          _
        // Predicated region
        $region17: #{tpu_custom_call.1} parent=11 // pred_check
          %p150 = pneg %p85
        $region18: #{tpu_custom_call.1} parent=11 // pred_check_branch
          %152 = sbr.rel (%p150) target = $region20
        $region19: #{tpu_custom_call.1} parent=11 // pred_region
          _
        $region20: #{tpu_custom_call.1} parent=11 // pred_fallthru
          _
        // Predicated region
        $region21: #{tpu_custom_call.1} parent=11 // pred_check
          %p153 = pneg %p106
        $region22: #{tpu_custom_call.1} parent=11 // pred_check_branch
          %155 = sbr.rel (%p153) target = $region24
        $region23: #{tpu_custom_call.1} parent=11 // pred_region
          %s157 = ssub.s32 1536, 1536
          %158 = vsyncadd [#allocation7], %s157
          %s159 = sshll.u32 [#allocation6], 4
          %s160 = int_to_ptr.vmem [resolvable:$true] %s159
          %165 = dma.hbm_to_vmem [thread:$0]  %s3, 1536, %s160, [#allocation7], 512, 512, 32
        $region24: #{tpu_custom_call.1} parent=11 // pred_fallthru
          _
      $region12: #{tpu_custom_call.1} parent=5 // pred_fallthru
        _
      %p166 = scmp.lt.s32.totalorder %s17, 2
      // Predicated region
      $region25: #{tpu_custom_call.1} parent=5 // pred_check
        %p167 = pneg %p166
      $region26: #{tpu_custom_call.1} parent=5 // pred_check_branch
        %169 = sbr.rel (%p167) target = $region28
      $region27: #{tpu_custom_call.1} parent=5 // pred_region
        // Predicated region
        $region29: #{tpu_custom_call.1} parent=27 // pred_check
          %p170 = pneg %p37
        $region30: #{tpu_custom_call.1} parent=27 // pred_check_branch
          %172 = sbr.rel (%p170) target = $region32
        $region31: #{tpu_custom_call.1} parent=27 // pred_region
          %s173 = sand.u32 %s27, 1
          %s174 = scalar_lea.sflag [#allocation4], %s173
          %s175 = sand.u32 %s27, 1
          %s176 = smul.addr %s175, 4
          %s177 = scalar_lea.vmem [#allocation3], %s176
          %s178 = smul.u32 4, %s17
          %s180 = ssub.s32 64, 64
          %181 = vsyncadd %s174, %s180
          %s182 = smul.addr %s178, 16
          %s183 = scalar_lea.hbm %s0, %s182
          %s185 = sshll.u32 %s177, 4
          %s186 = int_to_ptr.vmem [resolvable:$true] %s185
          %188 = dma.hbm_to_vmem [thread:$0]  %s183, 64, %s186, %s174
        $region32: #{tpu_custom_call.1} parent=27 // pred_fallthru
          _
      $region28: #{tpu_custom_call.1} parent=5 // pred_fallthru
        _
      %p189 = scmp.le.s32.totalorder 1, %s17
      %p190 = scmp.lt.s32.totalorder %s17, 3
      %p191 = pnand %p189, %p190
      %p192 = pneg %p191
      // Predicated region
      $region33: #{tpu_custom_call.1} parent=5 // pred_check
        _
      $region34: #{tpu_custom_call.1} parent=5 // pred_check_branch
        %194 = sbr.rel (%p191) target = $region36
      $region35: #{tpu_custom_call.1} parent=5 // pred_region
        %s195 = ssub.s32 %s17, 1
        %s196 = sand.u32 %s30, 1
        %s197 = scalar_lea.sflag [#allocation4], %s196
        %s198 = sand.u32 %s30, 1
        %s199 = smul.addr %s198, 4
        %s200 = scalar_lea.vmem [#allocation3], %s199
        // Predicated region
        $region37: #{tpu_custom_call.1} parent=35 // pred_check
          %p201 = pneg %p43
        $region38: #{tpu_custom_call.1} parent=35 // pred_check_branch
          %203 = sbr.rel (%p201) target = $region40
        $region39: #{tpu_custom_call.1} parent=35 // pred_region
          %204 = dma.done %s197, 64
        $region40: #{tpu_custom_call.1} parent=35 // pred_fallthru
          _
        // Predicated region
        $region41: #{tpu_custom_call.1} parent=35 // pred_check
          %p205 = pneg %p106
        $region42: #{tpu_custom_call.1} parent=35 // pred_check_branch
          %207 = sbr.rel (%p205) target = $region44
        $region43: #{tpu_custom_call.1} parent=35 // pred_region
          %208 = dma.done [#allocation7], 1536
        $region44: #{tpu_custom_call.1} parent=35 // pred_fallthru
          _
        %s209 = sand.u32 %s30, 1
        %s210 = scalar_lea.sflag [#allocation4], %s209
        %s211 = sand.u32 %s30, 1
        %s212 = smul.addr %s211, 4
        %s213 = scalar_lea.vmem [#allocation3], %s212
        %p214 = pneg %p43
        %p215 = pneg %p40
        %p216 = pneg %p64
        %p217 = pneg %p61
        %p218 = pneg %p85
        %p219 = pneg %p82
        %p220 = pneg %p106
        %p221 = pneg %p103
        %p222 = pneg %p132
        %p223 = pneg %p129
        %s224 = sand.u32 %s119, 1
        %s225 = scalar_lea.sflag [#allocation5], %s224
        %s226 = sand.u32 %s119, 1
        %s227 = smul.addr %s226, 64
        %s228 = scalar_lea.vmem [#allocation8], %s227
        %s229 = smul.u32 4, %s22
        %s230 = smul.u32 4, %s22
        %v231 = vld [vmem:[%s200] sm:$0xf]
        %v233 = vlaneseq
        %v234 = vshrl.u32 %v233, 7
        %v235 = vsub.s32 0, %v234
        %v236 = vrot.slane %v231, %v235
        %v237 = vlaneseq
        %v238 = vshrl.u32 %v237, 7
        %v239 = vsub.s32 1, %v238
        %v240 = vrot.slane %v231, %v239
        %v241 = vlaneseq
        %v242 = vshrl.u32 %v241, 7
        %v243 = vsub.s32 2, %v242
        %v244 = vrot.slane %v231, %v243
        %v245 = vlaneseq
        %v246 = vshrl.u32 %v245, 7
        %v247 = vsub.s32 3, %v246
        %v248 = vrot.slane %v231, %v247
        %253 = vrot.lane.b32.xlu0 %v236, 34
        %v254 = vpop.permute.xlu0 %253
        %255 = vrot.lane.b32.xlu0 %v240, 34
        %v256 = vpop.permute.xlu0 %255
        %257 = vrot.lane.b32.xlu0 %v244, 34
        %v258 = vpop.permute.xlu0 %257
        %259 = vrot.lane.b32.xlu0 %v248, 34
        %v260 = vpop.permute.xlu0 %259
        %v261 = vlaneseq
        %v262 = vand.u32 %v261, 127
        %vm263 = vcmp.lt.s32.totalorder %v262, 34
        %v264 = vsel %vm263, %v258, %v260
        %v265 = vsel %vm263, %v256, %v258
        %v266 = vsel %vm263, %v254, %v256
        %v267 = vsel %vm263, %v260, %v254
        %v268 = vld [vmem:[#allocation6] ss:$8 sm:$0xf]
        %v270 = vlaneseq
        %v271 = vshrl.u32 %v270, 7
        %v272 = vsub.s32 0, %v271
        %v273 = vrot.slane %v268, %v272
        %v274 = vlaneseq
        %v275 = vshrl.u32 %v274, 7
        %v276 = vsub.s32 1, %v275
        %v277 = vrot.slane %v268, %v276
        %v278 = vlaneseq
        %v279 = vshrl.u32 %v278, 7
        %v280 = vsub.s32 2, %v279
        %v281 = vrot.slane %v268, %v280
        %v282 = vlaneseq
        %v283 = vshrl.u32 %v282, 7
        %v284 = vsub.s32 3, %v283
        %v285 = vrot.slane %v268, %v284
        %v290 = vmul.f32 %v267, %v273
        %v291 = vmul.f32 %v266, %v277
        %v292 = vmul.f32 %v265, %v281
        %v293 = vmul.f32 %v264, %v285
        %v298 = vcombine.low %v290, %v291
        %v299 = vcombine.low %v292, %v293
        %v301 = vunpack.c.l.s4 1966171168
        %v302 = vunpack.c.0.s8 %v301
        %v303 = vlaneseq
        %v304 = vshrl.u32 %v303, 7
        %v305 = vsub.s32 %v302, %v304
        %v306 = vrot.slane %v298, %v305
        %v308 = vunpack.c.l.s4 1966171168
        %v309 = vunpack.c.0.s8 %v308
        %v310 = vlaneseq
        %v311 = vshrl.u32 %v310, 7
        %v312 = vsub.s32 %v309, %v311
        %v313 = vrot.slane %v299, %v312
        %v314 = vcombine.low %v306, %v313
        %v316 = vunpack.c.l.s4 1966171168
        %v317 = vunpack.c.0.s8 %v316
        %v318 = vlaneseq
        %v319 = vshrl.u32 %v318, 7
        %v320 = vsub.s32 %v317, %v319
        %v321 = vrot.slane %v314, %v320
        %v323 = vlaneseq
        %vm324 = vcmp.ge.s32.totalorder %v323, 0
        %vm325 = vcmp.lt.s32.totalorder %v323, 512
        %vm326 = vmand %vm324, %vm325
        %327 = vst.msk [vmem:[#allocation2] ss:$8 sm:$0xf] %vm326, %v321
        %328 = vst.msk [vmem:[#allocation2] ss:$8 sm:$0x0] %vm326, %v321
        %329 = vrot.lane.b32.xlu0 %v236, 33
        %v330 = vpop.permute.xlu0 %329
        %331 = vrot.lane.b32.xlu0 %v240, 33
        %v332 = vpop.permute.xlu0 %331
        %333 = vrot.lane.b32.xlu0 %v244, 33
        %v334 = vpop.permute.xlu0 %333
        %335 = vrot.lane.b32.xlu0 %v248, 33
        %v336 = vpop.permute.xlu0 %335
        %vm337 = vcmp.lt.s32.totalorder %v262, 33
        %v338 = vsel %vm337, %v334, %v336
        %v339 = vsel %vm337, %v332, %v334
        %v340 = vsel %vm337, %v330, %v332
        %v341 = vsel %vm337, %v336, %v330
        %s342 = scalar_lea.vmem [#allocation6], 1
        %v343 = vld [vmem:[%s342] ss:$8 sm:$0xf]
        %v345 = vlaneseq
        %v346 = vshrl.u32 %v345, 7
        %v347 = vsub.s32 0, %v346
        %v348 = vrot.slane %v343, %v347
        %v349 = vlaneseq
        %v350 = vshrl.u32 %v349, 7
        %v351 = vsub.s32 1, %v350
        %v352 = vrot.slane %v343, %v351
        %v353 = vlaneseq
        %v354 = vshrl.u32 %v353, 7
        %v355 = vsub.s32 2, %v354
        %v356 = vrot.slane %v343, %v355
        %v357 = vlaneseq
        %v358 = vshrl.u32 %v357, 7
        %v359 = vsub.s32 3, %v358
        %v360 = vrot.slane %v343, %v359
        %v365 = vmul.f32 %v341, %v348
        %v366 = vmul.f32 %v340, %v352
        %v367 = vmul.f32 %v339, %v356
        %v368 = vmul.f32 %v338, %v360
        %v373 = vcombine.low %v365, %v366
        %v374 = vcombine.low %v367, %v368
        %v376 = vunpack.c.l.s4 1966171168
        %v377 = vunpack.c.0.s8 %v376
        %v378 = vlaneseq
        %v379 = vshrl.u32 %v378, 7
        %v380 = vsub.s32 %v377, %v379
        %v381 = vrot.slane %v373, %v380
        %v383 = vunpack.c.l.s4 1966171168
        %v384 = vunpack.c.0.s8 %v383
        %v385 = vlaneseq
        %v386 = vshrl.u32 %v385, 7
        %v387 = vsub.s32 %v384, %v386
        %v388 = vrot.slane %v374, %v387
        %v389 = vcombine.low %v381, %v388
        %v391 = vunpack.c.l.s4 1966171168
        %v392 = vunpack.c.0.s8 %v391
        %v393 = vlaneseq
        %v394 = vshrl.u32 %v393, 7
        %v395 = vsub.s32 %v392, %v394
        %v396 = vrot.slane %v389, %v395
        %s398 = scalar_lea.vmem [#allocation2], 1
        %399 = vst.msk [vmem:[%s398] ss:$8 sm:$0xf] %vm326, %v396
        %400 = vst.msk [vmem:[%s398] ss:$8 sm:$0x0] %vm326, %v396
        %401 = vrot.lane.b32.xlu0 %v236, 32
        %v402 = vpop.permute.xlu0 %401
        %403 = vrot.lane.b32.xlu0 %v240, 32
        %v404 = vpop.permute.xlu0 %403
        %405 = vrot.lane.b32.xlu0 %v244, 32
        %v406 = vpop.permute.xlu0 %405
        %407 = vrot.lane.b32.xlu0 %v248, 32
        %v408 = vpop.permute.xlu0 %407
        %vm409 = vcmp.lt.s32.totalorder %v262, 32
        %v410 = vsel %vm409, %v406, %v408
        %v411 = vsel %vm409, %v404, %v406
        %v412 = vsel %vm409, %v402, %v404
        %v413 = vsel %vm409, %v408, %v402
        %s414 = scalar_lea.vmem [#allocation6], 2
        %v415 = vld [vmem:[%s414] ss:$8 sm:$0xf]
        %v417 = vlaneseq
        %v418 = vshrl.u32 %v417, 7
        %v419 = vsub.s32 0, %v418
        %v420 = vrot.slane %v415, %v419
        %v421 = vlaneseq
        %v422 = vshrl.u32 %v421, 7
        %v423 = vsub.s32 1, %v422
        %v424 = vrot.slane %v415, %v423
        %v425 = vlaneseq
        %v426 = vshrl.u32 %v425, 7
        %v427 = vsub.s32 2, %v426
        %v428 = vrot.slane %v415, %v427
        %v429 = vlaneseq
        %v430 = vshrl.u32 %v429, 7
        %v431 = vsub.s32 3, %v430
        %v432 = vrot.slane %v415, %v431
        %v437 = vmul.f32 %v413, %v420
        %v438 = vmul.f32 %v412, %v424
        %v439 = vmul.f32 %v411, %v428
        %v440 = vmul.f32 %v410, %v432
        %v445 = vcombine.low %v437, %v438
        %v446 = vcombine.low %v439, %v440
        %v448 = vunpack.c.l.s4 1966171168
        %v449 = vunpack.c.0.s8 %v448
        %v450 = vlaneseq
        %v451 = vshrl.u32 %v450, 7
        %v452 = vsub.s32 %v449, %v451
        %v453 = vrot.slane %v445, %v452
        %v455 = vunpack.c.l.s4 1966171168
        %v456 = vunpack.c.0.s8 %v455
        %v457 = vlaneseq
        %v458 = vshrl.u32 %v457, 7
        %v459 = vsub.s32 %v456, %v458
        %v460 = vrot.slane %v446, %v459
        %v461 = vcombine.low %v453, %v460
        %v463 = vunpack.c.l.s4 1966171168
        %v464 = vunpack.c.0.s8 %v463
        %v465 = vlaneseq
        %v466 = vshrl.u32 %v465, 7
        %v467 = vsub.s32 %v464, %v466
        %v468 = vrot.slane %v461, %v467
        %s470 = scalar_lea.vmem [#allocation2], 2
        %471 = vst.msk [vmem:[%s470] ss:$8 sm:$0xf] %vm326, %v468
        %472 = vst.msk [vmem:[%s470] ss:$8 sm:$0x0] %vm326, %v468
        %473 = vrot.lane.b32.xlu0 %v236, 31
        %v474 = vpop.permute.xlu0 %473
        %475 = vrot.lane.b32.xlu0 %v240, 31
        %v476 = vpop.permute.xlu0 %475
        %477 = vrot.lane.b32.xlu0 %v244, 31
        %v478 = vpop.permute.xlu0 %477
        %479 = vrot.lane.b32.xlu0 %v248, 31
        %v480 = vpop.permute.xlu0 %479
        %vm481 = vcmp.lt.s32.totalorder %v262, 31
        %v482 = vsel %vm481, %v478, %v480
        %v483 = vsel %vm481, %v476, %v478
        %v484 = vsel %vm481, %v474, %v476
        %v485 = vsel %vm481, %v480, %v474
        %s486 = scalar_lea.vmem [#allocation6], 3
        %v487 = vld [vmem:[%s486] ss:$8 sm:$0xf]
        %v489 = vlaneseq
        %v490 = vshrl.u32 %v489, 7
        %v491 = vsub.s32 0, %v490
        %v492 = vrot.slane %v487, %v491
        %v493 = vlaneseq
        %v494 = vshrl.u32 %v493, 7
        %v495 = vsub.s32 1, %v494
        %v496 = vrot.slane %v487, %v495
        %v497 = vlaneseq
        %v498 = vshrl.u32 %v497, 7
        %v499 = vsub.s32 2, %v498
        %v500 = vrot.slane %v487, %v499
        %v501 = vlaneseq
        %v502 = vshrl.u32 %v501, 7
        %v503 = vsub.s32 3, %v502
        %v504 = vrot.slane %v487, %v503
        %v509 = vmul.f32 %v485, %v492
        %v510 = vmul.f32 %v484, %v496
        %v511 = vmul.f32 %v483, %v500
        %v512 = vmul.f32 %v482, %v504
        %v517 = vcombine.low %v509, %v510
        %v518 = vcombine.low %v511, %v512
        %v520 = vunpack.c.l.s4 1966171168
        %v521 = vunpack.c.0.s8 %v520
        %v522 = vlaneseq
        %v523 = vshrl.u32 %v522, 7
        %v524 = vsub.s32 %v521, %v523
        %v525 = vrot.slane %v517, %v524
        %v527 = vunpack.c.l.s4 1966171168
        %v528 = vunpack.c.0.s8 %v527
        %v529 = vlaneseq
        %v530 = vshrl.u32 %v529, 7
        %v531 = vsub.s32 %v528, %v530
        %v532 = vrot.slane %v518, %v531
        %v533 = vcombine.low %v525, %v532
        %v535 = vunpack.c.l.s4 1966171168
        %v536 = vunpack.c.0.s8 %v535
        %v537 = vlaneseq
        %v538 = vshrl.u32 %v537, 7
        %v539 = vsub.s32 %v536, %v538
        %v540 = vrot.slane %v533, %v539
        %s542 = scalar_lea.vmem [#allocation2], 3
        %543 = vst.msk [vmem:[%s542] ss:$8 sm:$0xf] %vm326, %v540
        %544 = vst.msk [vmem:[%s542] ss:$8 sm:$0x0] %vm326, %v540
        %545 = vrot.lane.b32.xlu0 %v236, 30
        %v546 = vpop.permute.xlu0 %545
        %547 = vrot.lane.b32.xlu0 %v240, 30
        %v548 = vpop.permute.xlu0 %547
        %549 = vrot.lane.b32.xlu0 %v244, 30
        %v550 = vpop.permute.xlu0 %549
        %551 = vrot.lane.b32.xlu0 %v248, 30
        %v552 = vpop.permute.xlu0 %551
        %vm553 = vcmp.lt.s32.totalorder %v262, 30
        %v554 = vsel %vm553, %v550, %v552
        %v555 = vsel %vm553, %v548, %v550
        %v556 = vsel %vm553, %v546, %v548
        %v557 = vsel %vm553, %v552, %v546
        %s558 = scalar_lea.vmem [#allocation6], 4
        %v559 = vld [vmem:[%s558] ss:$8 sm:$0xf]
        %v561 = vlaneseq
        %v562 = vshrl.u32 %v561, 7
        %v563 = vsub.s32 0, %v562
        %v564 = vrot.slane %v559, %v563
        %v565 = vlaneseq
        %v566 = vshrl.u32 %v565, 7
        %v567 = vsub.s32 1, %v566
        %v568 = vrot.slane %v559, %v567
        %v569 = vlaneseq
        %v570 = vshrl.u32 %v569, 7
        %v571 = vsub.s32 2, %v570
        %v572 = vrot.slane %v559, %v571
        %v573 = vlaneseq
        %v574 = vshrl.u32 %v573, 7
        %v575 = vsub.s32 3, %v574
        %v576 = vrot.slane %v559, %v575
        %v581 = vmul.f32 %v557, %v564
        %v582 = vmul.f32 %v556, %v568
        %v583 = vmul.f32 %v555, %v572
        %v584 = vmul.f32 %v554, %v576
        %v589 = vcombine.low %v581, %v582
        %v590 = vcombine.low %v583, %v584
        %v592 = vunpack.c.l.s4 1966171168
        %v593 = vunpack.c.0.s8 %v592
        %v594 = vlaneseq
        %v595 = vshrl.u32 %v594, 7
        %v596 = vsub.s32 %v593, %v595
        %v597 = vrot.slane %v589, %v596
        %v599 = vunpack.c.l.s4 1966171168
        %v600 = vunpack.c.0.s8 %v599
        %v601 = vlaneseq
        %v602 = vshrl.u32 %v601, 7
        %v603 = vsub.s32 %v600, %v602
        %v604 = vrot.slane %v590, %v603
        %v605 = vcombine.low %v597, %v604
        %v607 = vunpack.c.l.s4 1966171168
        %v608 = vunpack.c.0.s8 %v607
        %v609 = vlaneseq
        %v610 = vshrl.u32 %v609, 7
        %v611 = vsub.s32 %v608, %v610
        %v612 = vrot.slane %v605, %v611
        %s614 = scalar_lea.vmem [#allocation2], 4
        %615 = vst.msk [vmem:[%s614] ss:$8 sm:$0xf] %vm326, %v612
        %616 = vst.msk [vmem:[%s614] ss:$8 sm:$0x0] %vm326, %v612
        %617 = vrot.lane.b32.xlu0 %v236, 2
        %v618 = vpop.permute.xlu0 %617
        %619 = vrot.lane.b32.xlu0 %v240, 2
        %v620 = vpop.permute.xlu0 %619
        %621 = vrot.lane.b32.xlu0 %v244, 2
        %v622 = vpop.permute.xlu0 %621
        %623 = vrot.lane.b32.xlu0 %v248, 2
        %v624 = vpop.permute.xlu0 %623
        %vm625 = vcmp.lt.s32.totalorder %v262, 2
        %v626 = vsel %vm625, %v622, %v624
        %v627 = vsel %vm625, %v620, %v622
        %v628 = vsel %vm625, %v618, %v620
        %v629 = vsel %vm625, %v624, %v618
        %s630 = scalar_lea.vmem [#allocation6], 5
        %v631 = vld [vmem:[%s630] ss:$8 sm:$0xf]
        %v633 = vlaneseq
        %v634 = vshrl.u32 %v633, 7
        %v635 = vsub.s32 0, %v634
        %v636 = vrot.slane %v631, %v635
        %v637 = vlaneseq
        %v638 = vshrl.u32 %v637, 7
        %v639 = vsub.s32 1, %v638
        %v640 = vrot.slane %v631, %v639
        %v641 = vlaneseq
        %v642 = vshrl.u32 %v641, 7
        %v643 = vsub.s32 2, %v642
        %v644 = vrot.slane %v631, %v643
        %v645 = vlaneseq
        %v646 = vshrl.u32 %v645, 7
        %v647 = vsub.s32 3, %v646
        %v648 = vrot.slane %v631, %v647
        %v653 = vmul.f32 %v629, %v636
        %v654 = vmul.f32 %v628, %v640
        %v655 = vmul.f32 %v627, %v644
        %v656 = vmul.f32 %v626, %v648
        %v661 = vcombine.low %v653, %v654
        %v662 = vcombine.low %v655, %v656
        %v664 = vunpack.c.l.s4 1966171168
        %v665 = vunpack.c.0.s8 %v664
        %v666 = vlaneseq
        %v667 = vshrl.u32 %v666, 7
        %v668 = vsub.s32 %v665, %v667
        %v669 = vrot.slane %v661, %v668
        %v671 = vunpack.c.l.s4 1966171168
        %v672 = vunpack.c.0.s8 %v671
        %v673 = vlaneseq
        %v674 = vshrl.u32 %v673, 7
        %v675 = vsub.s32 %v672, %v674
        %v676 = vrot.slane %v662, %v675
        %v677 = vcombine.low %v669, %v676
        %v679 = vunpack.c.l.s4 1966171168
        %v680 = vunpack.c.0.s8 %v679
        %v681 = vlaneseq
        %v682 = vshrl.u32 %v681, 7
        %v683 = vsub.s32 %v680, %v682
        %v684 = vrot.slane %v677, %v683
        %s686 = scalar_lea.vmem [#allocation2], 5
        %687 = vst.msk [vmem:[%s686] ss:$8 sm:$0xf] %vm326, %v684
        %688 = vst.msk [vmem:[%s686] ss:$8 sm:$0x0] %vm326, %v684
        %689 = vrot.lane.b32.xlu0 %v236, 1
        %v690 = vpop.permute.xlu0 %689
        %691 = vrot.lane.b32.xlu0 %v240, 1
        %v692 = vpop.permute.xlu0 %691
        %693 = vrot.lane.b32.xlu0 %v244, 1
        %v694 = vpop.permute.xlu0 %693
        %695 = vrot.lane.b32.xlu0 %v248, 1
        %v696 = vpop.permute.xlu0 %695
        %vm697 = vcmp.lt.s32.totalorder %v262, 1
        %v698 = vsel %vm697, %v694, %v696
        %v699 = vsel %vm697, %v692, %v694
        %v700 = vsel %vm697, %v690, %v692
        %v701 = vsel %vm697, %v696, %v690
        %s702 = scalar_lea.vmem [#allocation6], 6
        %v703 = vld [vmem:[%s702] ss:$8 sm:$0xf]
        %v705 = vlaneseq
        %v706 = vshrl.u32 %v705, 7
        %v707 = vsub.s32 0, %v706
        %v708 = vrot.slane %v703, %v707
        %v709 = vlaneseq
        %v710 = vshrl.u32 %v709, 7
        %v711 = vsub.s32 1, %v710
        %v712 = vrot.slane %v703, %v711
        %v713 = vlaneseq
        %v714 = vshrl.u32 %v713, 7
        %v715 = vsub.s32 2, %v714
        %v716 = vrot.slane %v703, %v715
        %v717 = vlaneseq
        %v718 = vshrl.u32 %v717, 7
        %v719 = vsub.s32 3, %v718
        %v720 = vrot.slane %v703, %v719
        %v725 = vmul.f32 %v701, %v708
        %v726 = vmul.f32 %v700, %v712
        %v727 = vmul.f32 %v699, %v716
        %v728 = vmul.f32 %v698, %v720
        %v733 = vcombine.low %v725, %v726
        %v734 = vcombine.low %v727, %v728
        %v736 = vunpack.c.l.s4 1966171168
        %v737 = vunpack.c.0.s8 %v736
        %v738 = vlaneseq
        %v739 = vshrl.u32 %v738, 7
        %v740 = vsub.s32 %v737, %v739
        %v741 = vrot.slane %v733, %v740
        %v743 = vunpack.c.l.s4 1966171168
        %v744 = vunpack.c.0.s8 %v743
        %v745 = vlaneseq
        %v746 = vshrl.u32 %v745, 7
        %v747 = vsub.s32 %v744, %v746
        %v748 = vrot.slane %v734, %v747
        %v749 = vcombine.low %v741, %v748
        %v751 = vunpack.c.l.s4 1966171168
        %v752 = vunpack.c.0.s8 %v751
        %v753 = vlaneseq
        %v754 = vshrl.u32 %v753, 7
        %v755 = vsub.s32 %v752, %v754
        %v756 = vrot.slane %v749, %v755
        %s758 = scalar_lea.vmem [#allocation2], 6
        %759 = vst.msk [vmem:[%s758] ss:$8 sm:$0xf] %vm326, %v756
        %760 = vst.msk [vmem:[%s758] ss:$8 sm:$0x0] %vm326, %v756
        %s761 = scalar_lea.vmem [#allocation2], 7
        %762 = vst.msk [vmem:[%s761] ss:$8 sm:$0xf] %vm326, %v231
        %763 = vst.msk [vmem:[%s761] ss:$8 sm:$0x0] %vm326, %v231
        %764 = vrot.lane.b32.xlu0 %v236, 127
        %v765 = vpop.permute.xlu0 %764
        %766 = vrot.lane.b32.xlu0 %v240, 127
        %v767 = vpop.permute.xlu0 %766
        %768 = vrot.lane.b32.xlu0 %v244, 127
        %v769 = vpop.permute.xlu0 %768
        %770 = vrot.lane.b32.xlu0 %v248, 127
        %v771 = vpop.permute.xlu0 %770
        %vm772 = vcmp.lt.s32.totalorder %v262, 127
        %v773 = vsel %vm772, %v769, %v771
        %v774 = vsel %vm772, %v767, %v769
        %v775 = vsel %vm772, %v765, %v767
        %v776 = vsel %vm772, %v771, %v765
        %s777 = scalar_lea.vmem [#allocation6], 32
        %v778 = vld [vmem:[%s777] ss:$8 sm:$0xf]
        %v780 = vlaneseq
        %v781 = vshrl.u32 %v780, 7
        %v782 = vsub.s32 0, %v781
        %v783 = vrot.slane %v778, %v782
        %v784 = vlaneseq
        %v785 = vshrl.u32 %v784, 7
        %v786 = vsub.s32 1, %v785
        %v787 = vrot.slane %v778, %v786
        %v788 = vlaneseq
        %v789 = vshrl.u32 %v788, 7
        %v790 = vsub.s32 2, %v789
        %v791 = vrot.slane %v778, %v790
        %v792 = vlaneseq
        %v793 = vshrl.u32 %v792, 7
        %v794 = vsub.s32 3, %v793
        %v795 = vrot.slane %v778, %v794
        %v800 = vmul.f32 %v775, %v783
        %v801 = vmul.f32 %v774, %v787
        %v802 = vmul.f32 %v773, %v791
        %v803 = vmul.f32 %v776, %v795
        %v808 = vcombine.low %v800, %v801
        %v809 = vcombine.low %v802, %v803
        %v811 = vunpack.c.l.s4 1966171168
        %v812 = vunpack.c.0.s8 %v811
        %v813 = vlaneseq
        %v814 = vshrl.u32 %v813, 7
        %v815 = vsub.s32 %v812, %v814
        %v816 = vrot.slane %v808, %v815
        %v818 = vunpack.c.l.s4 1966171168
        %v819 = vunpack.c.0.s8 %v818
        %v820 = vlaneseq
        %v821 = vshrl.u32 %v820, 7
        %v822 = vsub.s32 %v819, %v821
        %v823 = vrot.slane %v809, %v822
        %v824 = vcombine.low %v816, %v823
        %v826 = vunpack.c.l.s4 1966171168
        %v827 = vunpack.c.0.s8 %v826
        %v828 = vlaneseq
        %v829 = vshrl.u32 %v828, 7
        %v830 = vsub.s32 %v827, %v829
        %v831 = vrot.slane %v824, %v830
        %s833 = scalar_lea.vmem [#allocation2], 32
        %834 = vst.msk [vmem:[%s833] ss:$8 sm:$0xf] %vm326, %v831
        %835 = vst.msk [vmem:[%s833] ss:$8 sm:$0x0] %vm326, %v831
        %836 = vrot.lane.b32.xlu0 %v236, 126
        %v837 = vpop.permute.xlu0 %836
        %838 = vrot.lane.b32.xlu0 %v240, 126
        %v839 = vpop.permute.xlu0 %838
        %840 = vrot.lane.b32.xlu0 %v244, 126
        %v841 = vpop.permute.xlu0 %840
        %842 = vrot.lane.b32.xlu0 %v248, 126
        %v843 = vpop.permute.xlu0 %842
        %vm844 = vcmp.lt.s32.totalorder %v262, 126
        %v845 = vsel %vm844, %v841, %v843
        %v846 = vsel %vm844, %v839, %v841
        %v847 = vsel %vm844, %v837, %v839
        %v848 = vsel %vm844, %v843, %v837
        %s849 = scalar_lea.vmem [#allocation6], 33
        %v850 = vld [vmem:[%s849] ss:$8 sm:$0xf]
        %v852 = vlaneseq
        %v853 = vshrl.u32 %v852, 7
        %v854 = vsub.s32 0, %v853
        %v855 = vrot.slane %v850, %v854
        %v856 = vlaneseq
        %v857 = vshrl.u32 %v856, 7
        %v858 = vsub.s32 1, %v857
        %v859 = vrot.slane %v850, %v858
        %v860 = vlaneseq
        %v861 = vshrl.u32 %v860, 7
        %v862 = vsub.s32 2, %v861
        %v863 = vrot.slane %v850, %v862
        %v864 = vlaneseq
        %v865 = vshrl.u32 %v864, 7
        %v866 = vsub.s32 3, %v865
        %v867 = vrot.slane %v850, %v866
        %v872 = vmul.f32 %v847, %v855
        %v873 = vmul.f32 %v846, %v859
        %v874 = vmul.f32 %v845, %v863
        %v875 = vmul.f32 %v848, %v867
        %v880 = vcombine.low %v872, %v873
        %v881 = vcombine.low %v874, %v875
        %v883 = vunpack.c.l.s4 1966171168
        %v884 = vunpack.c.0.s8 %v883
        %v885 = vlaneseq
        %v886 = vshrl.u32 %v885, 7
        %v887 = vsub.s32 %v884, %v886
        %v888 = vrot.slane %v880, %v887
        %v890 = vunpack.c.l.s4 1966171168
        %v891 = vunpack.c.0.s8 %v890
        %v892 = vlaneseq
        %v893 = vshrl.u32 %v892, 7
        %v894 = vsub.s32 %v891, %v893
        %v895 = vrot.slane %v881, %v894
        %v896 = vcombine.low %v888, %v895
        %v898 = vunpack.c.l.s4 1966171168
        %v899 = vunpack.c.0.s8 %v898
        %v900 = vlaneseq
        %v901 = vshrl.u32 %v900, 7
        %v902 = vsub.s32 %v899, %v901
        %v903 = vrot.slane %v896, %v902
        %s905 = scalar_lea.vmem [#allocation2], 33
        %906 = vst.msk [vmem:[%s905] ss:$8 sm:$0xf] %vm326, %v903
        %907 = vst.msk [vmem:[%s905] ss:$8 sm:$0x0] %vm326, %v903
        %908 = vrot.lane.b32.xlu0 %v236, 98
        %v909 = vpop.permute.xlu0 %908
        %910 = vrot.lane.b32.xlu0 %v240, 98
        %v911 = vpop.permute.xlu0 %910
        %912 = vrot.lane.b32.xlu0 %v244, 98
        %v913 = vpop.permute.xlu0 %912
        %914 = vrot.lane.b32.xlu0 %v248, 98
        %v915 = vpop.permute.xlu0 %914
        %vm916 = vcmp.lt.s32.totalorder %v262, 98
        %v917 = vsel %vm916, %v913, %v915
        %v918 = vsel %vm916, %v911, %v913
        %v919 = vsel %vm916, %v909, %v911
        %v920 = vsel %vm916, %v915, %v909
        %s921 = scalar_lea.vmem [#allocation6], 34
        %v922 = vld [vmem:[%s921] ss:$8 sm:$0xf]
        %v924 = vlaneseq
        %v925 = vshrl.u32 %v924, 7
        %v926 = vsub.s32 0, %v925
        %v927 = vrot.slane %v922, %v926
        %v928 = vlaneseq
        %v929 = vshrl.u32 %v928, 7
        %v930 = vsub.s32 1, %v929
        %v931 = vrot.slane %v922, %v930
        %v932 = vlaneseq
        %v933 = vshrl.u32 %v932, 7
        %v934 = vsub.s32 2, %v933
        %v935 = vrot.slane %v922, %v934
        %v936 = vlaneseq
        %v937 = vshrl.u32 %v936, 7
        %v938 = vsub.s32 3, %v937
        %v939 = vrot.slane %v922, %v938
        %v944 = vmul.f32 %v919, %v927
        %v945 = vmul.f32 %v918, %v931
        %v946 = vmul.f32 %v917, %v935
        %v947 = vmul.f32 %v920, %v939
        %v952 = vcombine.low %v944, %v945
        %v953 = vcombine.low %v946, %v947
        %v955 = vunpack.c.l.s4 1966171168
        %v956 = vunpack.c.0.s8 %v955
        %v957 = vlaneseq
        %v958 = vshrl.u32 %v957, 7
        %v959 = vsub.s32 %v956, %v958
        %v960 = vrot.slane %v952, %v959
        %v962 = vunpack.c.l.s4 1966171168
        %v963 = vunpack.c.0.s8 %v962
        %v964 = vlaneseq
        %v965 = vshrl.u32 %v964, 7
        %v966 = vsub.s32 %v963, %v965
        %v967 = vrot.slane %v953, %v966
        %v968 = vcombine.low %v960, %v967
        %v970 = vunpack.c.l.s4 1966171168
        %v971 = vunpack.c.0.s8 %v970
        %v972 = vlaneseq
        %v973 = vshrl.u32 %v972, 7
        %v974 = vsub.s32 %v971, %v973
        %v975 = vrot.slane %v968, %v974
        %s977 = scalar_lea.vmem [#allocation2], 34
        %978 = vst.msk [vmem:[%s977] ss:$8 sm:$0xf] %vm326, %v975
        %979 = vst.msk [vmem:[%s977] ss:$8 sm:$0x0] %vm326, %v975
        %980 = vrot.lane.b32.xlu0 %v236, 97
        %v981 = vpop.permute.xlu0 %980
        %982 = vrot.lane.b32.xlu0 %v240, 97
        %v983 = vpop.permute.xlu0 %982
        %984 = vrot.lane.b32.xlu0 %v244, 97
        %v985 = vpop.permute.xlu0 %984
        %986 = vrot.lane.b32.xlu0 %v248, 97
        %v987 = vpop.permute.xlu0 %986
        %vm988 = vcmp.lt.s32.totalorder %v262, 97
        %v989 = vsel %vm988, %v985, %v987
        %v990 = vsel %vm988, %v983, %v985
        %v991 = vsel %vm988, %v981, %v983
        %v992 = vsel %vm988, %v987, %v981
        %s993 = scalar_lea.vmem [#allocation6], 35
        %v994 = vld [vmem:[%s993] ss:$8 sm:$0xf]
        %v996 = vlaneseq
        %v997 = vshrl.u32 %v996, 7
        %v998 = vsub.s32 0, %v997
        %v999 = vrot.slane %v994, %v998
        %v1000 = vlaneseq
        %v1001 = vshrl.u32 %v1000, 7
        %v1002 = vsub.s32 1, %v1001
        %v1003 = vrot.slane %v994, %v1002
        %v1004 = vlaneseq
        %v1005 = vshrl.u32 %v1004, 7
        %v1006 = vsub.s32 2, %v1005
        %v1007 = vrot.slane %v994, %v1006
        %v1008 = vlaneseq
        %v1009 = vshrl.u32 %v1008, 7
        %v1010 = vsub.s32 3, %v1009
        %v1011 = vrot.slane %v994, %v1010
        %v1016 = vmul.f32 %v991, %v999
        %v1017 = vmul.f32 %v990, %v1003
        %v1018 = vmul.f32 %v989, %v1007
        %v1019 = vmul.f32 %v992, %v1011
        %v1024 = vcombine.low %v1016, %v1017
        %v1025 = vcombine.low %v1018, %v1019
        %v1027 = vunpack.c.l.s4 1966171168
        %v1028 = vunpack.c.0.s8 %v1027
        %v1029 = vlaneseq
        %v1030 = vshrl.u32 %v1029, 7
        %v1031 = vsub.s32 %v1028, %v1030
        %v1032 = vrot.slane %v1024, %v1031
        %v1034 = vunpack.c.l.s4 1966171168
        %v1035 = vunpack.c.0.s8 %v1034
        %v1036 = vlaneseq
        %v1037 = vshrl.u32 %v1036, 7
        %v1038 = vsub.s32 %v1035, %v1037
        %v1039 = vrot.slane %v1025, %v1038
        %v1040 = vcombine.low %v1032, %v1039
        %v1042 = vunpack.c.l.s4 1966171168
        %v1043 = vunpack.c.0.s8 %v1042
        %v1044 = vlaneseq
        %v1045 = vshrl.u32 %v1044, 7
        %v1046 = vsub.s32 %v1043, %v1045
        %v1047 = vrot.slane %v1040, %v1046
        %s1049 = scalar_lea.vmem [#allocation2], 35
        %1050 = vst.msk [vmem:[%s1049] ss:$8 sm:$0xf] %vm326, %v1047
        %1051 = vst.msk [vmem:[%s1049] ss:$8 sm:$0x0] %vm326, %v1047
        %1052 = vrot.lane.b32.xlu0 %v236, 96
        %v1053 = vpop.permute.xlu0 %1052
        %1054 = vrot.lane.b32.xlu0 %v240, 96
        %v1055 = vpop.permute.xlu0 %1054
        %1056 = vrot.lane.b32.xlu0 %v244, 96
        %v1057 = vpop.permute.xlu0 %1056
        %1058 = vrot.lane.b32.xlu0 %v248, 96
        %v1059 = vpop.permute.xlu0 %1058
        %vm1060 = vcmp.lt.s32.totalorder %v262, 96
        %v1061 = vsel %vm1060, %v1057, %v1059
        %v1062 = vsel %vm1060, %v1055, %v1057
        %v1063 = vsel %vm1060, %v1053, %v1055
        %v1064 = vsel %vm1060, %v1059, %v1053
        %s1065 = scalar_lea.vmem [#allocation6], 36
        %v1066 = vld [vmem:[%s1065] ss:$8 sm:$0xf]
        %v1068 = vlaneseq
        %v1069 = vshrl.u32 %v1068, 7
        %v1070 = vsub.s32 0, %v1069
        %v1071 = vrot.slane %v1066, %v1070
        %v1072 = vlaneseq
        %v1073 = vshrl.u32 %v1072, 7
        %v1074 = vsub.s32 1, %v1073
        %v1075 = vrot.slane %v1066, %v1074
        %v1076 = vlaneseq
        %v1077 = vshrl.u32 %v1076, 7
        %v1078 = vsub.s32 2, %v1077
        %v1079 = vrot.slane %v1066, %v1078
        %v1080 = vlaneseq
        %v1081 = vshrl.u32 %v1080, 7
        %v1082 = vsub.s32 3, %v1081
        %v1083 = vrot.slane %v1066, %v1082
        %v1088 = vmul.f32 %v1063, %v1071
        %v1089 = vmul.f32 %v1062, %v1075
        %v1090 = vmul.f32 %v1061, %v1079
        %v1091 = vmul.f32 %v1064, %v1083
        %v1096 = vcombine.low %v1088, %v1089
        %v1097 = vcombine.low %v1090, %v1091
        %v1099 = vunpack.c.l.s4 1966171168
        %v1100 = vunpack.c.0.s8 %v1099
        %v1101 = vlaneseq
        %v1102 = vshrl.u32 %v1101, 7
        %v1103 = vsub.s32 %v1100, %v1102
        %v1104 = vrot.slane %v1096, %v1103
        %v1106 = vunpack.c.l.s4 1966171168
        %v1107 = vunpack.c.0.s8 %v1106
        %v1108 = vlaneseq
        %v1109 = vshrl.u32 %v1108, 7
        %v1110 = vsub.s32 %v1107, %v1109
        %v1111 = vrot.slane %v1097, %v1110
        %v1112 = vcombine.low %v1104, %v1111
        %v1114 = vunpack.c.l.s4 1966171168
        %v1115 = vunpack.c.0.s8 %v1114
        %v1116 = vlaneseq
        %v1117 = vshrl.u32 %v1116, 7
        %v1118 = vsub.s32 %v1115, %v1117
        %v1119 = vrot.slane %v1112, %v1118
        %s1121 = scalar_lea.vmem [#allocation2], 36
        %1122 = vst.msk [vmem:[%s1121] ss:$8 sm:$0xf] %vm326, %v1119
        %1123 = vst.msk [vmem:[%s1121] ss:$8 sm:$0x0] %vm326, %v1119
        %1124 = vrot.lane.b32.xlu0 %v236, 95
        %v1125 = vpop.permute.xlu0 %1124
        %1126 = vrot.lane.b32.xlu0 %v240, 95
        %v1127 = vpop.permute.xlu0 %1126
        %1128 = vrot.lane.b32.xlu0 %v244, 95
        %v1129 = vpop.permute.xlu0 %1128
        %1130 = vrot.lane.b32.xlu0 %v248, 95
        %v1131 = vpop.permute.xlu0 %1130
        %vm1132 = vcmp.lt.s32.totalorder %v262, 95
        %v1133 = vsel %vm1132, %v1129, %v1131
        %v1134 = vsel %vm1132, %v1127, %v1129
        %v1135 = vsel %vm1132, %v1125, %v1127
        %v1136 = vsel %vm1132, %v1131, %v1125
        %s1137 = scalar_lea.vmem [#allocation6], 37
        %v1138 = vld [vmem:[%s1137] ss:$8 sm:$0xf]
        %v1140 = vlaneseq
        %v1141 = vshrl.u32 %v1140, 7
        %v1142 = vsub.s32 0, %v1141
        %v1143 = vrot.slane %v1138, %v1142
        %v1144 = vlaneseq
        %v1145 = vshrl.u32 %v1144, 7
        %v1146 = vsub.s32 1, %v1145
        %v1147 = vrot.slane %v1138, %v1146
        %v1148 = vlaneseq
        %v1149 = vshrl.u32 %v1148, 7
        %v1150 = vsub.s32 2, %v1149
        %v1151 = vrot.slane %v1138, %v1150
        %v1152 = vlaneseq
        %v1153 = vshrl.u32 %v1152, 7
        %v1154 = vsub.s32 3, %v1153
        %v1155 = vrot.slane %v1138, %v1154
        %v1160 = vmul.f32 %v1135, %v1143
        %v1161 = vmul.f32 %v1134, %v1147
        %v1162 = vmul.f32 %v1133, %v1151
        %v1163 = vmul.f32 %v1136, %v1155
        %v1168 = vcombine.low %v1160, %v1161
        %v1169 = vcombine.low %v1162, %v1163
        %v1171 = vunpack.c.l.s4 1966171168
        %v1172 = vunpack.c.0.s8 %v1171
        %v1173 = vlaneseq
        %v1174 = vshrl.u32 %v1173, 7
        %v1175 = vsub.s32 %v1172, %v1174
        %v1176 = vrot.slane %v1168, %v1175
        %v1178 = vunpack.c.l.s4 1966171168
        %v1179 = vunpack.c.0.s8 %v1178
        %v1180 = vlaneseq
        %v1181 = vshrl.u32 %v1180, 7
        %v1182 = vsub.s32 %v1179, %v1181
        %v1183 = vrot.slane %v1169, %v1182
        %v1184 = vcombine.low %v1176, %v1183
        %v1186 = vunpack.c.l.s4 1966171168
        %v1187 = vunpack.c.0.s8 %v1186
        %v1188 = vlaneseq
        %v1189 = vshrl.u32 %v1188, 7
        %v1190 = vsub.s32 %v1187, %v1189
        %v1191 = vrot.slane %v1184, %v1190
        %s1193 = scalar_lea.vmem [#allocation2], 37
        %1194 = vst.msk [vmem:[%s1193] ss:$8 sm:$0xf] %vm326, %v1191
        %1195 = vst.msk [vmem:[%s1193] ss:$8 sm:$0x0] %vm326, %v1191
        %1196 = vrot.lane.b32.xlu0 %v236, 94
        %v1197 = vpop.permute.xlu0 %1196
        %1198 = vrot.lane.b32.xlu0 %v240, 94
        %v1199 = vpop.permute.xlu0 %1198
        %1200 = vrot.lane.b32.xlu0 %v244, 94
        %v1201 = vpop.permute.xlu0 %1200
        %1202 = vrot.lane.b32.xlu0 %v248, 94
        %v1203 = vpop.permute.xlu0 %1202
        %vm1204 = vcmp.lt.s32.totalorder %v262, 94
        %v1205 = vsel %vm1204, %v1201, %v1203
        %v1206 = vsel %vm1204, %v1199, %v1201
        %v1207 = vsel %vm1204, %v1197, %v1199
        %v1208 = vsel %vm1204, %v1203, %v1197
        %s1209 = scalar_lea.vmem [#allocation6], 38
        %v1210 = vld [vmem:[%s1209] ss:$8 sm:$0xf]
        %v1212 = vlaneseq
        %v1213 = vshrl.u32 %v1212, 7
        %v1214 = vsub.s32 0, %v1213
        %v1215 = vrot.slane %v1210, %v1214
        %v1216 = vlaneseq
        %v1217 = vshrl.u32 %v1216, 7
        %v1218 = vsub.s32 1, %v1217
        %v1219 = vrot.slane %v1210, %v1218
        %v1220 = vlaneseq
        %v1221 = vshrl.u32 %v1220, 7
        %v1222 = vsub.s32 2, %v1221
        %v1223 = vrot.slane %v1210, %v1222
        %v1224 = vlaneseq
        %v1225 = vshrl.u32 %v1224, 7
        %v1226 = vsub.s32 3, %v1225
        %v1227 = vrot.slane %v1210, %v1226
        %v1232 = vmul.f32 %v1207, %v1215
        %v1233 = vmul.f32 %v1206, %v1219
        %v1234 = vmul.f32 %v1205, %v1223
        %v1235 = vmul.f32 %v1208, %v1227
        %v1240 = vcombine.low %v1232, %v1233
        %v1241 = vcombine.low %v1234, %v1235
        %v1243 = vunpack.c.l.s4 1966171168
        %v1244 = vunpack.c.0.s8 %v1243
        %v1245 = vlaneseq
        %v1246 = vshrl.u32 %v1245, 7
        %v1247 = vsub.s32 %v1244, %v1246
        %v1248 = vrot.slane %v1240, %v1247
        %v1250 = vunpack.c.l.s4 1966171168
        %v1251 = vunpack.c.0.s8 %v1250
        %v1252 = vlaneseq
        %v1253 = vshrl.u32 %v1252, 7
        %v1254 = vsub.s32 %v1251, %v1253
        %v1255 = vrot.slane %v1241, %v1254
        %v1256 = vcombine.low %v1248, %v1255
        %v1258 = vunpack.c.l.s4 1966171168
        %v1259 = vunpack.c.0.s8 %v1258
        %v1260 = vlaneseq
        %v1261 = vshrl.u32 %v1260, 7
        %v1262 = vsub.s32 %v1259, %v1261
        %v1263 = vrot.slane %v1256, %v1262
        %s1265 = scalar_lea.vmem [#allocation2], 38
        %1266 = vst.msk [vmem:[%s1265] ss:$8 sm:$0xf] %vm326, %v1263
        %1267 = vst.msk [vmem:[%s1265] ss:$8 sm:$0x0] %vm326, %v1263
        %1268 = vrot.lane.b32.xlu0 %v236, 66
        %v1269 = vpop.permute.xlu0 %1268
        %1270 = vrot.lane.b32.xlu0 %v240, 66
        %v1271 = vpop.permute.xlu0 %1270
        %1272 = vrot.lane.b32.xlu0 %v244, 66
        %v1273 = vpop.permute.xlu0 %1272
        %1274 = vrot.lane.b32.xlu0 %v248, 66
        %v1275 = vpop.permute.xlu0 %1274
        %vm1276 = vcmp.lt.s32.totalorder %v262, 66
        %v1277 = vsel %vm1276, %v1273, %v1275
        %v1278 = vsel %vm1276, %v1271, %v1273
        %v1279 = vsel %vm1276, %v1269, %v1271
        %v1280 = vsel %vm1276, %v1275, %v1269
        %s1281 = scalar_lea.vmem [#allocation6], 39
        %v1282 = vld [vmem:[%s1281] ss:$8 sm:$0xf]
        %v1284 = vlaneseq
        %v1285 = vshrl.u32 %v1284, 7
        %v1286 = vsub.s32 0, %v1285
        %v1287 = vrot.slane %v1282, %v1286
        %v1288 = vlaneseq
        %v1289 = vshrl.u32 %v1288, 7
        %v1290 = vsub.s32 1, %v1289
        %v1291 = vrot.slane %v1282, %v1290
        %v1292 = vlaneseq
        %v1293 = vshrl.u32 %v1292, 7
        %v1294 = vsub.s32 2, %v1293
        %v1295 = vrot.slane %v1282, %v1294
        %v1296 = vlaneseq
        %v1297 = vshrl.u32 %v1296, 7
        %v1298 = vsub.s32 3, %v1297
        %v1299 = vrot.slane %v1282, %v1298
        %v1304 = vmul.f32 %v1279, %v1287
        %v1305 = vmul.f32 %v1278, %v1291
        %v1306 = vmul.f32 %v1277, %v1295
        %v1307 = vmul.f32 %v1280, %v1299
        %v1312 = vcombine.low %v1304, %v1305
        %v1313 = vcombine.low %v1306, %v1307
        %v1315 = vunpack.c.l.s4 1966171168
        %v1316 = vunpack.c.0.s8 %v1315
        %v1317 = vlaneseq
        %v1318 = vshrl.u32 %v1317, 7
        %v1319 = vsub.s32 %v1316, %v1318
        %v1320 = vrot.slane %v1312, %v1319
        %v1322 = vunpack.c.l.s4 1966171168
        %v1323 = vunpack.c.0.s8 %v1322
        %v1324 = vlaneseq
        %v1325 = vshrl.u32 %v1324, 7
        %v1326 = vsub.s32 %v1323, %v1325
        %v1327 = vrot.slane %v1313, %v1326
        %v1328 = vcombine.low %v1320, %v1327
        %v1330 = vunpack.c.l.s4 1966171168
        %v1331 = vunpack.c.0.s8 %v1330
        %v1332 = vlaneseq
        %v1333 = vshrl.u32 %v1332, 7
        %v1334 = vsub.s32 %v1331, %v1333
        %v1335 = vrot.slane %v1328, %v1334
        %s1337 = scalar_lea.vmem [#allocation2], 39
        %1338 = vst.msk [vmem:[%s1337] ss:$8 sm:$0xf] %vm326, %v1335
        %1339 = vst.msk [vmem:[%s1337] ss:$8 sm:$0x0] %vm326, %v1335
        %1340 = vrot.lane.b32.xlu0 %v236, 65
        %v1341 = vpop.permute.xlu0 %1340
        %1342 = vrot.lane.b32.xlu0 %v240, 65
        %v1343 = vpop.permute.xlu0 %1342
        %1344 = vrot.lane.b32.xlu0 %v244, 65
        %v1345 = vpop.permute.xlu0 %1344
        %1346 = vrot.lane.b32.xlu0 %v248, 65
        %v1347 = vpop.permute.xlu0 %1346
        %vm1348 = vcmp.lt.s32.totalorder %v262, 65
        %v1349 = vsel %vm1348, %v1345, %v1347
        %v1350 = vsel %vm1348, %v1343, %v1345
        %v1351 = vsel %vm1348, %v1341, %v1343
        %v1352 = vsel %vm1348, %v1347, %v1341
        %s1353 = scalar_lea.vmem [#allocation6], 64
        %v1354 = vld [vmem:[%s1353] ss:$8 sm:$0xf]
        %v1356 = vlaneseq
        %v1357 = vshrl.u32 %v1356, 7
        %v1358 = vsub.s32 0, %v1357
        %v1359 = vrot.slane %v1354, %v1358
        %v1360 = vlaneseq
        %v1361 = vshrl.u32 %v1360, 7
        %v1362 = vsub.s32 1, %v1361
        %v1363 = vrot.slane %v1354, %v1362
        %v1364 = vlaneseq
        %v1365 = vshrl.u32 %v1364, 7
        %v1366 = vsub.s32 2, %v1365
        %v1367 = vrot.slane %v1354, %v1366
        %v1368 = vlaneseq
        %v1369 = vshrl.u32 %v1368, 7
        %v1370 = vsub.s32 3, %v1369
        %v1371 = vrot.slane %v1354, %v1370
        %v1376 = vmul.f32 %v1351, %v1359
        %v1377 = vmul.f32 %v1350, %v1363
        %v1378 = vmul.f32 %v1349, %v1367
        %v1379 = vmul.f32 %v1352, %v1371
        %v1384 = vcombine.low %v1376, %v1377
        %v1385 = vcombine.low %v1378, %v1379
        %v1387 = vunpack.c.l.s4 1966171168
        %v1388 = vunpack.c.0.s8 %v1387
        %v1389 = vlaneseq
        %v1390 = vshrl.u32 %v1389, 7
        %v1391 = vsub.s32 %v1388, %v1390
        %v1392 = vrot.slane %v1384, %v1391
        %v1394 = vunpack.c.l.s4 1966171168
        %v1395 = vunpack.c.0.s8 %v1394
        %v1396 = vlaneseq
        %v1397 = vshrl.u32 %v1396, 7
        %v1398 = vsub.s32 %v1395, %v1397
        %v1399 = vrot.slane %v1385, %v1398
        %v1400 = vcombine.low %v1392, %v1399
        %v1402 = vunpack.c.l.s4 1966171168
        %v1403 = vunpack.c.0.s8 %v1402
        %v1404 = vlaneseq
        %v1405 = vshrl.u32 %v1404, 7
        %v1406 = vsub.s32 %v1403, %v1405
        %v1407 = vrot.slane %v1400, %v1406
        %s1409 = scalar_lea.vmem [#allocation2], 64
        %1410 = vst.msk [vmem:[%s1409] ss:$8 sm:$0xf] %vm326, %v1407
        %1411 = vst.msk [vmem:[%s1409] ss:$8 sm:$0x0] %vm326, %v1407
        %1412 = vrot.lane.b32.xlu0 %v236, 64
        %v1413 = vpop.permute.xlu0 %1412
        %1414 = vrot.lane.b32.xlu0 %v240, 64
        %v1415 = vpop.permute.xlu0 %1414
        %1416 = vrot.lane.b32.xlu0 %v244, 64
        %v1417 = vpop.permute.xlu0 %1416
        %1418 = vrot.lane.b32.xlu0 %v248, 64
        %v1419 = vpop.permute.xlu0 %1418
        %vm1420 = vcmp.lt.s32.totalorder %v262, 64
        %v1421 = vsel %vm1420, %v1417, %v1419
        %v1422 = vsel %vm1420, %v1415, %v1417
        %v1423 = vsel %vm1420, %v1413, %v1415
        %v1424 = vsel %vm1420, %v1419, %v1413
        %s1425 = scalar_lea.vmem [#allocation6], 65
        %v1426 = vld [vmem:[%s1425] ss:$8 sm:$0xf]
        %v1428 = vlaneseq
        %v1429 = vshrl.u32 %v1428, 7
        %v1430 = vsub.s32 0, %v1429
        %v1431 = vrot.slane %v1426, %v1430
        %v1432 = vlaneseq
        %v1433 = vshrl.u32 %v1432, 7
        %v1434 = vsub.s32 1, %v1433
        %v1435 = vrot.slane %v1426, %v1434
        %v1436 = vlaneseq
        %v1437 = vshrl.u32 %v1436, 7
        %v1438 = vsub.s32 2, %v1437
        %v1439 = vrot.slane %v1426, %v1438
        %v1440 = vlaneseq
        %v1441 = vshrl.u32 %v1440, 7
        %v1442 = vsub.s32 3, %v1441
        %v1443 = vrot.slane %v1426, %v1442
        %v1448 = vmul.f32 %v1423, %v1431
        %v1449 = vmul.f32 %v1422, %v1435
        %v1450 = vmul.f32 %v1421, %v1439
        %v1451 = vmul.f32 %v1424, %v1443
        %v1456 = vcombine.low %v1448, %v1449
        %v1457 = vcombine.low %v1450, %v1451
        %v1459 = vunpack.c.l.s4 1966171168
        %v1460 = vunpack.c.0.s8 %v1459
        %v1461 = vlaneseq
        %v1462 = vshrl.u32 %v1461, 7
        %v1463 = vsub.s32 %v1460, %v1462
        %v1464 = vrot.slane %v1456, %v1463
        %v1466 = vunpack.c.l.s4 1966171168
        %v1467 = vunpack.c.0.s8 %v1466
        %v1468 = vlaneseq
        %v1469 = vshrl.u32 %v1468, 7
        %v1470 = vsub.s32 %v1467, %v1469
        %v1471 = vrot.slane %v1457, %v1470
        %v1472 = vcombine.low %v1464, %v1471
        %v1474 = vunpack.c.l.s4 1966171168
        %v1475 = vunpack.c.0.s8 %v1474
        %v1476 = vlaneseq
        %v1477 = vshrl.u32 %v1476, 7
        %v1478 = vsub.s32 %v1475, %v1477
        %v1479 = vrot.slane %v1472, %v1478
        %s1481 = scalar_lea.vmem [#allocation2], 65
        %1482 = vst.msk [vmem:[%s1481] ss:$8 sm:$0xf] %vm326, %v1479
        %1483 = vst.msk [vmem:[%s1481] ss:$8 sm:$0x0] %vm326, %v1479
        %1484 = vrot.lane.b32.xlu0 %v236, 63
        %v1485 = vpop.permute.xlu0 %1484
        %1486 = vrot.lane.b32.xlu0 %v240, 63
        %v1487 = vpop.permute.xlu0 %1486
        %1488 = vrot.lane.b32.xlu0 %v244, 63
        %v1489 = vpop.permute.xlu0 %1488
        %1490 = vrot.lane.b32.xlu0 %v248, 63
        %v1491 = vpop.permute.xlu0 %1490
        %vm1492 = vcmp.lt.s32.totalorder %v262, 63
        %v1493 = vsel %vm1492, %v1489, %v1491
        %v1494 = vsel %vm1492, %v1487, %v1489
        %v1495 = vsel %vm1492, %v1485, %v1487
        %v1496 = vsel %vm1492, %v1491, %v1485
        %s1497 = scalar_lea.vmem [#allocation6], 66
        %v1498 = vld [vmem:[%s1497] ss:$8 sm:$0xf]
        %v1500 = vlaneseq
        %v1501 = vshrl.u32 %v1500, 7
        %v1502 = vsub.s32 0, %v1501
        %v1503 = vrot.slane %v1498, %v1502
        %v1504 = vlaneseq
        %v1505 = vshrl.u32 %v1504, 7
        %v1506 = vsub.s32 1, %v1505
        %v1507 = vrot.slane %v1498, %v1506
        %v1508 = vlaneseq
        %v1509 = vshrl.u32 %v1508, 7
        %v1510 = vsub.s32 2, %v1509
        %v1511 = vrot.slane %v1498, %v1510
        %v1512 = vlaneseq
        %v1513 = vshrl.u32 %v1512, 7
        %v1514 = vsub.s32 3, %v1513
        %v1515 = vrot.slane %v1498, %v1514
        %v1520 = vmul.f32 %v1495, %v1503
        %v1521 = vmul.f32 %v1494, %v1507
        %v1522 = vmul.f32 %v1493, %v1511
        %v1523 = vmul.f32 %v1496, %v1515
        %v1528 = vcombine.low %v1520, %v1521
        %v1529 = vcombine.low %v1522, %v1523
        %v1531 = vunpack.c.l.s4 1966171168
        %v1532 = vunpack.c.0.s8 %v1531
        %v1533 = vlaneseq
        %v1534 = vshrl.u32 %v1533, 7
        %v1535 = vsub.s32 %v1532, %v1534
        %v1536 = vrot.slane %v1528, %v1535
        %v1538 = vunpack.c.l.s4 1966171168
        %v1539 = vunpack.c.0.s8 %v1538
        %v1540 = vlaneseq
        %v1541 = vshrl.u32 %v1540, 7
        %v1542 = vsub.s32 %v1539, %v1541
        %v1543 = vrot.slane %v1529, %v1542
        %v1544 = vcombine.low %v1536, %v1543
        %v1546 = vunpack.c.l.s4 1966171168
        %v1547 = vunpack.c.0.s8 %v1546
        %v1548 = vlaneseq
        %v1549 = vshrl.u32 %v1548, 7
        %v1550 = vsub.s32 %v1547, %v1549
        %v1551 = vrot.slane %v1544, %v1550
        %s1553 = scalar_lea.vmem [#allocation2], 66
        %1554 = vst.msk [vmem:[%s1553] ss:$8 sm:$0xf] %vm326, %v1551
        %1555 = vst.msk [vmem:[%s1553] ss:$8 sm:$0x0] %vm326, %v1551
        %1556 = vrot.lane.b32.xlu0 %v236, 62
        %v1557 = vpop.permute.xlu0 %1556
        %1558 = vrot.lane.b32.xlu0 %v240, 62
        %v1559 = vpop.permute.xlu0 %1558
        %1560 = vrot.lane.b32.xlu0 %v244, 62
        %v1561 = vpop.permute.xlu0 %1560
        %1562 = vrot.lane.b32.xlu0 %v248, 62
        %v1563 = vpop.permute.xlu0 %1562
        %vm1564 = vcmp.lt.s32.totalorder %v262, 62
        %v1565 = vsel %vm1564, %v1561, %v1563
        %v1566 = vsel %vm1564, %v1559, %v1561
        %v1567 = vsel %vm1564, %v1557, %v1559
        %v1568 = vsel %vm1564, %v1563, %v1557
        %s1569 = scalar_lea.vmem [#allocation6], 67
        %v1570 = vld [vmem:[%s1569] ss:$8 sm:$0xf]
        %v1572 = vlaneseq
        %v1573 = vshrl.u32 %v1572, 7
        %v1574 = vsub.s32 0, %v1573
        %v1575 = vrot.slane %v1570, %v1574
        %v1576 = vlaneseq
        %v1577 = vshrl.u32 %v1576, 7
        %v1578 = vsub.s32 1, %v1577
        %v1579 = vrot.slane %v1570, %v1578
        %v1580 = vlaneseq
        %v1581 = vshrl.u32 %v1580, 7
        %v1582 = vsub.s32 2, %v1581
        %v1583 = vrot.slane %v1570, %v1582
        %v1584 = vlaneseq
        %v1585 = vshrl.u32 %v1584, 7
        %v1586 = vsub.s32 3, %v1585
        %v1587 = vrot.slane %v1570, %v1586
        %v1592 = vmul.f32 %v1567, %v1575
        %v1593 = vmul.f32 %v1566, %v1579
        %v1594 = vmul.f32 %v1565, %v1583
        %v1595 = vmul.f32 %v1568, %v1587
        %v1600 = vcombine.low %v1592, %v1593
        %v1601 = vcombine.low %v1594, %v1595
        %v1603 = vunpack.c.l.s4 1966171168
        %v1604 = vunpack.c.0.s8 %v1603
        %v1605 = vlaneseq
        %v1606 = vshrl.u32 %v1605, 7
        %v1607 = vsub.s32 %v1604, %v1606
        %v1608 = vrot.slane %v1600, %v1607
        %v1610 = vunpack.c.l.s4 1966171168
        %v1611 = vunpack.c.0.s8 %v1610
        %v1612 = vlaneseq
        %v1613 = vshrl.u32 %v1612, 7
        %v1614 = vsub.s32 %v1611, %v1613
        %v1615 = vrot.slane %v1601, %v1614
        %v1616 = vcombine.low %v1608, %v1615
        %v1618 = vunpack.c.l.s4 1966171168
        %v1619 = vunpack.c.0.s8 %v1618
        %v1620 = vlaneseq
        %v1621 = vshrl.u32 %v1620, 7
        %v1622 = vsub.s32 %v1619, %v1621
        %v1623 = vrot.slane %v1616, %v1622
        %s1625 = scalar_lea.vmem [#allocation2], 67
        %1626 = vst.msk [vmem:[%s1625] ss:$8 sm:$0xf] %vm326, %v1623
        %1627 = vst.msk [vmem:[%s1625] ss:$8 sm:$0x0] %vm326, %v1623
        %v1628 = vld [vmem:[%s1] sm:$0xff]
        %v1629 = vld [vmem:[%s1 + $0x8] sm:$0xf]
        %v1630 = vld [vmem:[#allocation2] sm:$0xff]
        %v1631 = vld [vmem:[#allocation2 + $0x8] sm:$0xff]
        %v1632 = vld [vmem:[#allocation2 + $0x10] sm:$0xff]
        %v1633 = vld [vmem:[#allocation2 + $0x18] sm:$0xff]
        %v1634 = vld [vmem:[#allocation2 + $0x20] sm:$0xff]
        %v1635 = vld [vmem:[#allocation2 + $0x28] sm:$0xff]
        %v1636 = vld [vmem:[#allocation2 + $0x30] sm:$0xff]
        %v1637 = vld [vmem:[#allocation2 + $0x38] sm:$0xff]
        %v1638 = vld [vmem:[#allocation2 + $0x40] sm:$0xf]
        %v1639 = vld [vmem:[#allocation2 + $0x48] sm:$0xf]
        %v1640 = vld [vmem:[#allocation2 + $0x50] sm:$0xf]
        %v1641 = vld [vmem:[#allocation2 + $0x58] sm:$0xf]
        %v1642 = vld [vmem:[%s2] sm:$0xff]
        %v1643 = vld [vmem:[%s2 + $0x8] sm:$0xf]
        %1645 = vset.pattern.permute.xlu0 0
        %1646 = vperm.xlu0 %1645, %v1642
        %v1647 = vpop.permute.xlu0 %1646
        %1650 = vset.pattern.permute.xlu0 0
        %1651 = vperm.xlu0 %1650, %v1643
        %v1652 = vpop.permute.xlu0 %1651
        %vm1654 = vcmask 162816
        %v1656 = vsel %vm1654, %v1628, 0
        %v1659 = vsel %vm1654, %v1629, 0
        %vm1661 = vcmask 1043456
        %v1663 = vsel %vm1661, %v1638, 0
        %v1666 = vsel %vm1661, %v1639, 0
        %v1669 = vsel %vm1661, %v1640, 0
        %v1672 = vsel %vm1661, %v1641, 0
        %1674 = vmatprep.subr.mxu0 0.0
        %1675 = vmatpush1.msra.mxu0 0.0
        %1676 = vmatprep.subr.mxu0 0.0
        %1677 = vmatpush1.msra.mxu0 0.0
        %1678 = vmatprep.subr.mxu0 0.0
        %1679 = vmatpush1.msra.mxu0 0.0
        %1680 = vmatprep.subr.mxu0 0.0
        %1681 = vmatpush1.msra.mxu0 0.0
        %1682 = vmatprep.subr.mxu0 0.0
        %1683 = vmatpush1.msra.mxu0 0.0
        %1684 = vmatprep.subr.mxu0 0.0
        %1685 = vmatpush1.msra.mxu0 0.0
        %1686 = vmatprep.subr.mxu0 0.0
        %1687 = vmatpush1.msra.mxu0 0.0
        %1688 = vmatprep.subr.mxu0 0.0
        %1689 = vmatpush1.msra.mxu0 0.0
        %1690 = vmatprep.subr.mxu0 0.0
        %1691 = vmatpush1.msra.mxu0 0.0
        %1692 = vmatprep.subr.mxu0 0.0
        %1693 = vmatpush1.msra.mxu0 0.0
        %1694 = vmatprep.subr.mxu0 0.0
        %1695 = vmatpush1.msra.mxu0 0.0
        %1696 = vmatprep.subr.mxu0 0.0
        %1697 = vmatpush1.msra.mxu0 0.0
        %1698 = vmatprep.subr.mxu0 0.0
        %1699 = vmatpush1.msra.mxu0 0.0
        %v1700 = vand.u32 %v1666, 4294901760
        %1701 = vmatprep.subr.mxu0 %v1700
        %v1702 = vand.u32 %v1663, 4294901760
        %1703 = vmatpush1.msra.mxu0 %v1702
        %v1704 = vand.u32 %v1635, 4294901760
        %1705 = vmatprep.subr.mxu0 %v1704
        %v1706 = vand.u32 %v1634, 4294901760
        %1707 = vmatpush1.msra.mxu0 %v1706
        %v1708 = vand.u32 %v1631, 4294901760
        %1709 = vmatprep.subr.mxu0 %v1708
        %v1710 = vand.u32 %v1630, 4294901760
        %1711 = vmatpush1.msra.mxu0 %v1710
        %1712 = vmatprep.subr.mxu0 0.0
        %1713 = vmatpush2.msra.mxu0 0.0
        %1714 = vmatprep.subr.mxu0 0.0
        %1715 = vmatpush2.msra.mxu0 0.0
        %1716 = vmatprep.subr.mxu0 0.0
        %1717 = vmatpush2.msra.mxu0 0.0
        %1718 = vmatprep.subr.mxu0 0.0
        %1719 = vmatpush2.msra.mxu0 0.0
        %1720 = vmatprep.subr.mxu0 0.0
        %1721 = vmatpush2.msra.mxu0 0.0
        %1722 = vmatprep.subr.mxu0 0.0
        %1723 = vmatpush2.msra.mxu0 0.0
        %1724 = vmatprep.subr.mxu0 0.0
        %1725 = vmatpush2.msra.mxu0 0.0
        %1726 = vmatprep.subr.mxu0 0.0
        %1727 = vmatpush2.msra.mxu0 0.0
        %1728 = vmatprep.subr.mxu0 0.0
        %1729 = vmatpush2.msra.mxu0 0.0
        %1730 = vmatprep.subr.mxu0 0.0
        %1731 = vmatpush2.msra.mxu0 0.0
        %1732 = vmatprep.subr.mxu0 0.0
        %1733 = vmatpush2.msra.mxu0 0.0
        %1734 = vmatprep.subr.mxu0 0.0
        %1735 = vmatpush2.msra.mxu0 0.0
        %1736 = vmatprep.subr.mxu0 0.0
        %1737 = vmatpush2.msra.mxu0 0.0
        %1738 = vmatprep.subr.mxu0 0.0
        %1739 = vmatpush2.msra.mxu0 0.0
        %1740 = vmatprep.subr.mxu0 0.0
        %1741 = vmatpush2.msra.mxu0 0.0
        %1742 = vmatprep.subr.mxu0 0.0
        %1743 = vmatpush2.msra.mxu0 0.0
        %1744 = vmatprep.mubr.f32.mxu0 0.0
        %v1745 = vand.u32 %v1656, 4294901760
        %v1746 = vsub.f32 %v1656, %v1745
        %v1747 = vand.u32 %v1746, 4294901760
        %v1748 = vsub.f32 %v1746, %v1747
        %v1749 = vand.u32 %v1748, 4294901760
        %1750 = vmatmul.mubr.f32.gmra.mxu0 %v1749
        %v1751 = vpop.f32.mrf.mxu0
        %v1752 = vadd.f32 %v1647, %v1751
        %v1753 = vpop.f32.mrf.mxu0
        %v1754 = vadd.f32 %v1647, %v1753
        %1755 = vmatprep.mubr.f32.mxu0 0.0
        %v1756 = vand.u32 %v1659, 4294901760
        %v1757 = vsub.f32 %v1659, %v1756
        %v1758 = vand.u32 %v1757, 4294901760
        %v1759 = vsub.f32 %v1757, %v1758
        %v1760 = vand.u32 %v1759, 4294901760
        %1761 = vmatmul.mubr.f32.gmra.mxu0 %v1760
        %v1762 = vpop.f32.mrf.mxu0
        %v1763 = vadd.f32 %v1652, %v1762
        %v1764 = vpop.f32.mrf.mxu0
        %v1765 = vadd.f32 %v1652, %v1764
        %1766 = vdwg.mxu0
        %1767 = vmatprep.subr.mxu0 0.0
        %1768 = vmatpush1.msra.mxu0 0.0
        %1769 = vmatprep.subr.mxu0 0.0
        %1770 = vmatpush1.msra.mxu0 0.0
        %1771 = vmatprep.subr.mxu0 0.0
        %1772 = vmatpush1.msra.mxu0 0.0
        %1773 = vmatprep.subr.mxu0 0.0
        %1774 = vmatpush1.msra.mxu0 0.0
        %1775 = vmatprep.subr.mxu0 0.0
        %1776 = vmatpush1.msra.mxu0 0.0
        %1777 = vmatprep.subr.mxu0 0.0
        %1778 = vmatpush1.msra.mxu0 0.0
        %1779 = vmatprep.subr.mxu0 0.0
        %1780 = vmatpush1.msra.mxu0 0.0
        %1781 = vmatprep.subr.mxu0 0.0
        %1782 = vmatpush1.msra.mxu0 0.0
        %1783 = vmatprep.subr.mxu0 0.0
        %1784 = vmatpush1.msra.mxu0 0.0
        %1785 = vmatprep.subr.mxu0 0.0
        %1786 = vmatpush1.msra.mxu0 0.0
        %1787 = vmatprep.subr.mxu0 0.0
        %1788 = vmatpush1.msra.mxu0 0.0
        %1789 = vmatprep.subr.mxu0 0.0
        %1790 = vmatpush1.msra.mxu0 0.0
        %1791 = vmatprep.subr.mxu0 0.0
        %1792 = vmatpush1.msra.mxu0 0.0
        %v1793 = vand.u32 %v1666, 4294901760
        %v1794 = vsub.f32 %v1666, %v1793
        %v1795 = vand.u32 %v1794, 4294901760
        %v1796 = vsub.f32 %v1794, %v1795
        %v1797 = vand.u32 %v1796, 4294901760
        %1798 = vmatprep.subr.mxu0 %v1797
        %v1799 = vand.u32 %v1663, 4294901760
        %v1800 = vsub.f32 %v1663, %v1799
        %v1801 = vand.u32 %v1800, 4294901760
        %v1802 = vsub.f32 %v1800, %v1801
        %v1803 = vand.u32 %v1802, 4294901760
        %1804 = vmatpush1.msra.mxu0 %v1803
        %v1805 = vand.u32 %v1635, 4294901760
        %v1806 = vsub.f32 %v1635, %v1805
        %v1807 = vand.u32 %v1806, 4294901760
        %v1808 = vsub.f32 %v1806, %v1807
        %v1809 = vand.u32 %v1808, 4294901760
        %1810 = vmatprep.subr.mxu0 %v1809
        %v1811 = vand.u32 %v1634, 4294901760
        %v1812 = vsub.f32 %v1634, %v1811
        %v1813 = vand.u32 %v1812, 4294901760
        %v1814 = vsub.f32 %v1812, %v1813
        %v1815 = vand.u32 %v1814, 4294901760
        %1816 = vmatpush1.msra.mxu0 %v1815
        %v1817 = vand.u32 %v1631, 4294901760
        %v1818 = vsub.f32 %v1631, %v1817
        %v1819 = vand.u32 %v1818, 4294901760
        %v1820 = vsub.f32 %v1818, %v1819
        %v1821 = vand.u32 %v1820, 4294901760
        %1822 = vmatprep.subr.mxu0 %v1821
        %v1823 = vand.u32 %v1630, 4294901760
        %v1824 = vsub.f32 %v1630, %v1823
        %v1825 = vand.u32 %v1824, 4294901760
        %v1826 = vsub.f32 %v1824, %v1825
        %v1827 = vand.u32 %v1826, 4294901760
        %1828 = vmatpush1.msra.mxu0 %v1827
        %1829 = vmatprep.subr.mxu0 0.0
        %1830 = vmatpush2.msra.mxu0 0.0
        %1831 = vmatprep.subr.mxu0 0.0
        %1832 = vmatpush2.msra.mxu0 0.0
        %1833 = vmatprep.subr.mxu0 0.0
        %1834 = vmatpush2.msra.mxu0 0.0
        %1835 = vmatprep.subr.mxu0 0.0
        %1836 = vmatpush2.msra.mxu0 0.0
        %1837 = vmatprep.subr.mxu0 0.0
        %1838 = vmatpush2.msra.mxu0 0.0
        %1839 = vmatprep.subr.mxu0 0.0
        %1840 = vmatpush2.msra.mxu0 0.0
        %1841 = vmatprep.subr.mxu0 0.0
        %1842 = vmatpush2.msra.mxu0 0.0
        %1843 = vmatprep.subr.mxu0 0.0
        %1844 = vmatpush2.msra.mxu0 0.0
        %1845 = vmatprep.subr.mxu0 0.0
        %1846 = vmatpush2.msra.mxu0 0.0
        %1847 = vmatprep.subr.mxu0 0.0
        %1848 = vmatpush2.msra.mxu0 0.0
        %1849 = vmatprep.subr.mxu0 0.0
        %1850 = vmatpush2.msra.mxu0 0.0
        %1851 = vmatprep.subr.mxu0 0.0
        %1852 = vmatpush2.msra.mxu0 0.0
        %1853 = vmatprep.subr.mxu0 0.0
        %1854 = vmatpush2.msra.mxu0 0.0
        %1855 = vmatprep.subr.mxu0 0.0
        %1856 = vmatpush2.msra.mxu0 0.0
        %1857 = vmatprep.subr.mxu0 0.0
        %1858 = vmatpush2.msra.mxu0 0.0
        %1859 = vmatprep.subr.mxu0 0.0
        %1860 = vmatpush2.msra.mxu0 0.0
        %1861 = vmatprep.mubr.f32.mxu0 0.0
        %v1862 = vand.u32 %v1656, 4294901760
        %1863 = vmatmul.mubr.f32.gmra.mxu0 %v1862
        %v1864 = vpop.f32.mrf.mxu0
        %v1865 = vadd.f32 %v1752, %v1864
        %v1866 = vpop.f32.mrf.mxu0
        %v1867 = vadd.f32 %v1754, %v1866
        %1868 = vmatprep.mubr.f32.mxu0 0.0
        %v1869 = vand.u32 %v1659, 4294901760
        %1870 = vmatmul.mubr.f32.gmra.mxu0 %v1869
        %v1871 = vpop.f32.mrf.mxu0
        %v1872 = vadd.f32 %v1763, %v1871
        %v1873 = vpop.f32.mrf.mxu0
        %v1874 = vadd.f32 %v1765, %v1873
        %1875 = vdwg.mxu0
        %1876 = vmatprep.subr.mxu0 0.0
        %1877 = vmatpush1.msra.mxu0 0.0
        %1878 = vmatprep.subr.mxu0 0.0
        %1879 = vmatpush1.msra.mxu0 0.0
        %1880 = vmatprep.subr.mxu0 0.0
        %1881 = vmatpush1.msra.mxu0 0.0
        %1882 = vmatprep.subr.mxu0 0.0
        %1883 = vmatpush1.msra.mxu0 0.0
        %1884 = vmatprep.subr.mxu0 0.0
        %1885 = vmatpush1.msra.mxu0 0.0
        %1886 = vmatprep.subr.mxu0 0.0
        %1887 = vmatpush1.msra.mxu0 0.0
        %1888 = vmatprep.subr.mxu0 0.0
        %1889 = vmatpush1.msra.mxu0 0.0
        %1890 = vmatprep.subr.mxu0 0.0
        %1891 = vmatpush1.msra.mxu0 0.0
        %1892 = vmatprep.subr.mxu0 0.0
        %1893 = vmatpush1.msra.mxu0 0.0
        %1894 = vmatprep.subr.mxu0 0.0
        %1895 = vmatpush1.msra.mxu0 0.0
        %1896 = vmatprep.subr.mxu0 0.0
        %1897 = vmatpush1.msra.mxu0 0.0
        %1898 = vmatprep.subr.mxu0 0.0
        %1899 = vmatpush1.msra.mxu0 0.0
        %1900 = vmatprep.subr.mxu0 0.0
        %1901 = vmatpush1.msra.mxu0 0.0
        %v1902 = vand.u32 %v1666, 4294901760
        %v1903 = vsub.f32 %v1666, %v1902
        %1904 = vmatprep.subr.mxu0 %v1903
        %v1905 = vand.u32 %v1663, 4294901760
        %v1906 = vsub.f32 %v1663, %v1905
        %1907 = vmatpush1.msra.mxu0 %v1906
        %v1908 = vand.u32 %v1635, 4294901760
        %v1909 = vsub.f32 %v1635, %v1908
        %1910 = vmatprep.subr.mxu0 %v1909
        %v1911 = vand.u32 %v1634, 4294901760
        %v1912 = vsub.f32 %v1634, %v1911
        %1913 = vmatpush1.msra.mxu0 %v1912
        %v1914 = vand.u32 %v1631, 4294901760
        %v1915 = vsub.f32 %v1631, %v1914
        %1916 = vmatprep.subr.mxu0 %v1915
        %v1917 = vand.u32 %v1630, 4294901760
        %v1918 = vsub.f32 %v1630, %v1917
        %1919 = vmatpush1.msra.mxu0 %v1918
        %1920 = vmatprep.subr.mxu0 0.0
        %1921 = vmatpush2.msra.mxu0 0.0
        %1922 = vmatprep.subr.mxu0 0.0
        %1923 = vmatpush2.msra.mxu0 0.0
        %1924 = vmatprep.subr.mxu0 0.0
        %1925 = vmatpush2.msra.mxu0 0.0
        %1926 = vmatprep.subr.mxu0 0.0
        %1927 = vmatpush2.msra.mxu0 0.0
        %1928 = vmatprep.subr.mxu0 0.0
        %1929 = vmatpush2.msra.mxu0 0.0
        %1930 = vmatprep.subr.mxu0 0.0
        %1931 = vmatpush2.msra.mxu0 0.0
        %1932 = vmatprep.subr.mxu0 0.0
        %1933 = vmatpush2.msra.mxu0 0.0
        %1934 = vmatprep.subr.mxu0 0.0
        %1935 = vmatpush2.msra.mxu0 0.0
        %1936 = vmatprep.subr.mxu0 0.0
        %1937 = vmatpush2.msra.mxu0 0.0
        %1938 = vmatprep.subr.mxu0 0.0
        %1939 = vmatpush2.msra.mxu0 0.0
        %1940 = vmatprep.subr.mxu0 0.0
        %1941 = vmatpush2.msra.mxu0 0.0
        %1942 = vmatprep.subr.mxu0 0.0
        %1943 = vmatpush2.msra.mxu0 0.0
        %1944 = vmatprep.subr.mxu0 0.0
        %1945 = vmatpush2.msra.mxu0 0.0
        %1946 = vmatprep.subr.mxu0 0.0
        %1947 = vmatpush2.msra.mxu0 0.0
        %1948 = vmatprep.subr.mxu0 0.0
        %1949 = vmatpush2.msra.mxu0 0.0
        %1950 = vmatprep.subr.mxu0 0.0
        %1951 = vmatpush2.msra.mxu0 0.0
        %1952 = vmatprep.mubr.f32.mxu0 0.0
        %v1953 = vand.u32 %v1656, 4294901760
        %v1954 = vsub.f32 %v1656, %v1953
        %1955 = vmatmul.mubr.f32.gmra.mxu0 %v1954
        %v1956 = vpop.f32.mrf.mxu0
        %v1957 = vadd.f32 %v1865, %v1956
        %v1958 = vpop.f32.mrf.mxu0
        %v1959 = vadd.f32 %v1867, %v1958
        %1960 = vmatprep.mubr.f32.mxu0 0.0
        %v1961 = vand.u32 %v1659, 4294901760
        %v1962 = vsub.f32 %v1659, %v1961
        %1963 = vmatmul.mubr.f32.gmra.mxu0 %v1962
        %v1964 = vpop.f32.mrf.mxu0
        %v1965 = vadd.f32 %v1872, %v1964
        %v1966 = vpop.f32.mrf.mxu0
        %v1967 = vadd.f32 %v1874, %v1966
        %1968 = vdwg.mxu0
        %1969 = vmatprep.subr.mxu0 0.0
        %1970 = vmatpush1.msra.mxu0 0.0
        %1971 = vmatprep.subr.mxu0 0.0
        %1972 = vmatpush1.msra.mxu0 0.0
        %1973 = vmatprep.subr.mxu0 0.0
        %1974 = vmatpush1.msra.mxu0 0.0
        %1975 = vmatprep.subr.mxu0 0.0
        %1976 = vmatpush1.msra.mxu0 0.0
        %1977 = vmatprep.subr.mxu0 0.0
        %1978 = vmatpush1.msra.mxu0 0.0
        %1979 = vmatprep.subr.mxu0 0.0
        %1980 = vmatpush1.msra.mxu0 0.0
        %1981 = vmatprep.subr.mxu0 0.0
        %1982 = vmatpush1.msra.mxu0 0.0
        %1983 = vmatprep.subr.mxu0 0.0
        %1984 = vmatpush1.msra.mxu0 0.0
        %1985 = vmatprep.subr.mxu0 0.0
        %1986 = vmatpush1.msra.mxu0 0.0
        %1987 = vmatprep.subr.mxu0 0.0
        %1988 = vmatpush1.msra.mxu0 0.0
        %1989 = vmatprep.subr.mxu0 0.0
        %1990 = vmatpush1.msra.mxu0 0.0
        %1991 = vmatprep.subr.mxu0 0.0
        %1992 = vmatpush1.msra.mxu0 0.0
        %1993 = vmatprep.subr.mxu0 0.0
        %1994 = vmatpush1.msra.mxu0 0.0
        %v1995 = vand.u32 %v1666, 4294901760
        %1996 = vmatprep.subr.mxu0 %v1995
        %v1997 = vand.u32 %v1663, 4294901760
        %1998 = vmatpush1.msra.mxu0 %v1997
        %v1999 = vand.u32 %v1635, 4294901760
        %2000 = vmatprep.subr.mxu0 %v1999
        %v2001 = vand.u32 %v1634, 4294901760
        %2002 = vmatpush1.msra.mxu0 %v2001
        %v2003 = vand.u32 %v1631, 4294901760
        %2004 = vmatprep.subr.mxu0 %v2003
        %v2005 = vand.u32 %v1630, 4294901760
        %2006 = vmatpush1.msra.mxu0 %v2005
        %2007 = vmatprep.subr.mxu0 0.0
        %2008 = vmatpush2.msra.mxu0 0.0
        %2009 = vmatprep.subr.mxu0 0.0
        %2010 = vmatpush2.msra.mxu0 0.0
        %2011 = vmatprep.subr.mxu0 0.0
        %2012 = vmatpush2.msra.mxu0 0.0
        %2013 = vmatprep.subr.mxu0 0.0
        %2014 = vmatpush2.msra.mxu0 0.0
        %2015 = vmatprep.subr.mxu0 0.0
        %2016 = vmatpush2.msra.mxu0 0.0
        %2017 = vmatprep.subr.mxu0 0.0
        %2018 = vmatpush2.msra.mxu0 0.0
        %2019 = vmatprep.subr.mxu0 0.0
        %2020 = vmatpush2.msra.mxu0 0.0
        %2021 = vmatprep.subr.mxu0 0.0
        %2022 = vmatpush2.msra.mxu0 0.0
        %2023 = vmatprep.subr.mxu0 0.0
        %2024 = vmatpush2.msra.mxu0 0.0
        %2025 = vmatprep.subr.mxu0 0.0
        %2026 = vmatpush2.msra.mxu0 0.0
        %2027 = vmatprep.subr.mxu0 0.0
        %2028 = vmatpush2.msra.mxu0 0.0
        %2029 = vmatprep.subr.mxu0 0.0
        %2030 = vmatpush2.msra.mxu0 0.0
        %2031 = vmatprep.subr.mxu0 0.0
        %2032 = vmatpush2.msra.mxu0 0.0
        %2033 = vmatprep.subr.mxu0 0.0
        %2034 = vmatpush2.msra.mxu0 0.0
        %2035 = vmatprep.subr.mxu0 0.0
        %2036 = vmatpush2.msra.mxu0 0.0
        %2037 = vmatprep.subr.mxu0 0.0
        %2038 = vmatpush2.msra.mxu0 0.0
        %2039 = vmatprep.mubr.f32.mxu0 0.0
        %v2040 = vand.u32 %v1656, 4294901760
        %v2041 = vsub.f32 %v1656, %v2040
        %v2042 = vand.u32 %v2041, 4294901760
        %2043 = vmatmul.mubr.f32.gmra.mxu0 %v2042
        %v2044 = vpop.f32.mrf.mxu0
        %v2045 = vadd.f32 %v1957, %v2044
        %v2046 = vpop.f32.mrf.mxu0
        %v2047 = vadd.f32 %v1959, %v2046
        %2048 = vmatprep.mubr.f32.mxu0 0.0
        %v2049 = vand.u32 %v1659, 4294901760
        %v2050 = vsub.f32 %v1659, %v2049
        %v2051 = vand.u32 %v2050, 4294901760
        %2052 = vmatmul.mubr.f32.gmra.mxu0 %v2051
        %v2053 = vpop.f32.mrf.mxu0
        %v2054 = vadd.f32 %v1965, %v2053
        %v2055 = vpop.f32.mrf.mxu0
        %v2056 = vadd.f32 %v1967, %v2055
        %2057 = vdwg.mxu0
        %2058 = vmatprep.subr.mxu0 0.0
        %2059 = vmatpush1.msra.mxu0 0.0
        %2060 = vmatprep.subr.mxu0 0.0
        %2061 = vmatpush1.msra.mxu0 0.0
        %2062 = vmatprep.subr.mxu0 0.0
        %2063 = vmatpush1.msra.mxu0 0.0
        %2064 = vmatprep.subr.mxu0 0.0
        %2065 = vmatpush1.msra.mxu0 0.0
        %2066 = vmatprep.subr.mxu0 0.0
        %2067 = vmatpush1.msra.mxu0 0.0
        %2068 = vmatprep.subr.mxu0 0.0
        %2069 = vmatpush1.msra.mxu0 0.0
        %2070 = vmatprep.subr.mxu0 0.0
        %2071 = vmatpush1.msra.mxu0 0.0
        %2072 = vmatprep.subr.mxu0 0.0
        %2073 = vmatpush1.msra.mxu0 0.0
        %2074 = vmatprep.subr.mxu0 0.0
        %2075 = vmatpush1.msra.mxu0 0.0
        %2076 = vmatprep.subr.mxu0 0.0
        %2077 = vmatpush1.msra.mxu0 0.0
        %2078 = vmatprep.subr.mxu0 0.0
        %2079 = vmatpush1.msra.mxu0 0.0
        %2080 = vmatprep.subr.mxu0 0.0
        %2081 = vmatpush1.msra.mxu0 0.0
        %2082 = vmatprep.subr.mxu0 0.0
        %2083 = vmatpush1.msra.mxu0 0.0
        %v2084 = vand.u32 %v1666, 4294901760
        %v2085 = vsub.f32 %v1666, %v2084
        %v2086 = vand.u32 %v2085, 4294901760
        %2087 = vmatprep.subr.mxu0 %v2086
        %v2088 = vand.u32 %v1663, 4294901760
        %v2089 = vsub.f32 %v1663, %v2088
        %v2090 = vand.u32 %v2089, 4294901760
        %2091 = vmatpush1.msra.mxu0 %v2090
        %v2092 = vand.u32 %v1635, 4294901760
        %v2093 = vsub.f32 %v1635, %v2092
        %v2094 = vand.u32 %v2093, 4294901760
        %2095 = vmatprep.subr.mxu0 %v2094
        %v2096 = vand.u32 %v1634, 4294901760
        %v2097 = vsub.f32 %v1634, %v2096
        %v2098 = vand.u32 %v2097, 4294901760
        %2099 = vmatpush1.msra.mxu0 %v2098
        %v2100 = vand.u32 %v1631, 4294901760
        %v2101 = vsub.f32 %v1631, %v2100
        %v2102 = vand.u32 %v2101, 4294901760
        %2103 = vmatprep.subr.mxu0 %v2102
        %v2104 = vand.u32 %v1630, 4294901760
        %v2105 = vsub.f32 %v1630, %v2104
        %v2106 = vand.u32 %v2105, 4294901760
        %2107 = vmatpush1.msra.mxu0 %v2106
        %2108 = vmatprep.subr.mxu0 0.0
        %2109 = vmatpush2.msra.mxu0 0.0
        %2110 = vmatprep.subr.mxu0 0.0
        %2111 = vmatpush2.msra.mxu0 0.0
        %2112 = vmatprep.subr.mxu0 0.0
        %2113 = vmatpush2.msra.mxu0 0.0
        %2114 = vmatprep.subr.mxu0 0.0
        %2115 = vmatpush2.msra.mxu0 0.0
        %2116 = vmatprep.subr.mxu0 0.0
        %2117 = vmatpush2.msra.mxu0 0.0
        %2118 = vmatprep.subr.mxu0 0.0
        %2119 = vmatpush2.msra.mxu0 0.0
        %2120 = vmatprep.subr.mxu0 0.0
        %2121 = vmatpush2.msra.mxu0 0.0
        %2122 = vmatprep.subr.mxu0 0.0
        %2123 = vmatpush2.msra.mxu0 0.0
        %2124 = vmatprep.subr.mxu0 0.0
        %2125 = vmatpush2.msra.mxu0 0.0
        %2126 = vmatprep.subr.mxu0 0.0
        %2127 = vmatpush2.msra.mxu0 0.0
        %2128 = vmatprep.subr.mxu0 0.0
        %2129 = vmatpush2.msra.mxu0 0.0
        %2130 = vmatprep.subr.mxu0 0.0
        %2131 = vmatpush2.msra.mxu0 0.0
        %2132 = vmatprep.subr.mxu0 0.0
        %2133 = vmatpush2.msra.mxu0 0.0
        %2134 = vmatprep.subr.mxu0 0.0
        %2135 = vmatpush2.msra.mxu0 0.0
        %2136 = vmatprep.subr.mxu0 0.0
        %2137 = vmatpush2.msra.mxu0 0.0
        %2138 = vmatprep.subr.mxu0 0.0
        %2139 = vmatpush2.msra.mxu0 0.0
        %2140 = vmatprep.mubr.f32.mxu0 0.0
        %v2141 = vand.u32 %v1656, 4294901760
        %2142 = vmatmul.mubr.f32.gmra.mxu0 %v2141
        %v2143 = vpop.f32.mrf.mxu0
        %v2144 = vadd.f32 %v2045, %v2143
        %v2145 = vpop.f32.mrf.mxu0
        %v2146 = vadd.f32 %v2047, %v2145
        %2147 = vmatprep.mubr.f32.mxu0 0.0
        %v2148 = vand.u32 %v1659, 4294901760
        %2149 = vmatmul.mubr.f32.gmra.mxu0 %v2148
        %v2150 = vpop.f32.mrf.mxu0
        %v2151 = vadd.f32 %v2054, %v2150
        %v2152 = vpop.f32.mrf.mxu0
        %v2153 = vadd.f32 %v2056, %v2152
        %2154 = vdwg.mxu0
        %2155 = vmatprep.subr.mxu0 0.0
        %2156 = vmatpush1.msra.mxu0 0.0
        %2157 = vmatprep.subr.mxu0 0.0
        %2158 = vmatpush1.msra.mxu0 0.0
        %2159 = vmatprep.subr.mxu0 0.0
        %2160 = vmatpush1.msra.mxu0 0.0
        %2161 = vmatprep.subr.mxu0 0.0
        %2162 = vmatpush1.msra.mxu0 0.0
        %2163 = vmatprep.subr.mxu0 0.0
        %2164 = vmatpush1.msra.mxu0 0.0
        %2165 = vmatprep.subr.mxu0 0.0
        %2166 = vmatpush1.msra.mxu0 0.0
        %2167 = vmatprep.subr.mxu0 0.0
        %2168 = vmatpush1.msra.mxu0 0.0
        %2169 = vmatprep.subr.mxu0 0.0
        %2170 = vmatpush1.msra.mxu0 0.0
        %2171 = vmatprep.subr.mxu0 0.0
        %2172 = vmatpush1.msra.mxu0 0.0
        %2173 = vmatprep.subr.mxu0 0.0
        %2174 = vmatpush1.msra.mxu0 0.0
        %2175 = vmatprep.subr.mxu0 0.0
        %2176 = vmatpush1.msra.mxu0 0.0
        %2177 = vmatprep.subr.mxu0 0.0
        %2178 = vmatpush1.msra.mxu0 0.0
        %2179 = vmatprep.subr.mxu0 0.0
        %2180 = vmatpush1.msra.mxu0 0.0
        %v2181 = vand.u32 %v1666, 4294901760
        %2182 = vmatprep.subr.mxu0 %v2181
        %v2183 = vand.u32 %v1663, 4294901760
        %2184 = vmatpush1.msra.mxu0 %v2183
        %v2185 = vand.u32 %v1635, 4294901760
        %2186 = vmatprep.subr.mxu0 %v2185
        %v2187 = vand.u32 %v1634, 4294901760
        %2188 = vmatpush1.msra.mxu0 %v2187
        %v2189 = vand.u32 %v1631, 4294901760
        %2190 = vmatprep.subr.mxu0 %v2189
        %v2191 = vand.u32 %v1630, 4294901760
        %2192 = vmatpush1.msra.mxu0 %v2191
        %2193 = vmatprep.subr.mxu0 0.0
        %2194 = vmatpush2.msra.mxu0 0.0
        %2195 = vmatprep.subr.mxu0 0.0
        %2196 = vmatpush2.msra.mxu0 0.0
        %2197 = vmatprep.subr.mxu0 0.0
        %2198 = vmatpush2.msra.mxu0 0.0
        %2199 = vmatprep.subr.mxu0 0.0
        %2200 = vmatpush2.msra.mxu0 0.0
        %2201 = vmatprep.subr.mxu0 0.0
        %2202 = vmatpush2.msra.mxu0 0.0
        %2203 = vmatprep.subr.mxu0 0.0
        %2204 = vmatpush2.msra.mxu0 0.0
        %2205 = vmatprep.subr.mxu0 0.0
        %2206 = vmatpush2.msra.mxu0 0.0
        %2207 = vmatprep.subr.mxu0 0.0
        %2208 = vmatpush2.msra.mxu0 0.0
        %2209 = vmatprep.subr.mxu0 0.0
        %2210 = vmatpush2.msra.mxu0 0.0
        %2211 = vmatprep.subr.mxu0 0.0
        %2212 = vmatpush2.msra.mxu0 0.0
        %2213 = vmatprep.subr.mxu0 0.0
        %2214 = vmatpush2.msra.mxu0 0.0
        %2215 = vmatprep.subr.mxu0 0.0
        %2216 = vmatpush2.msra.mxu0 0.0
        %2217 = vmatprep.subr.mxu0 0.0
        %2218 = vmatpush2.msra.mxu0 0.0
        %2219 = vmatprep.subr.mxu0 0.0
        %2220 = vmatpush2.msra.mxu0 0.0
        %2221 = vmatprep.subr.mxu0 0.0
        %2222 = vmatpush2.msra.mxu0 0.0
        %2223 = vmatprep.subr.mxu0 0.0
        %2224 = vmatpush2.msra.mxu0 0.0
        %2225 = vmatprep.mubr.f32.mxu0 0.0
        %v2226 = vand.u32 %v1656, 4294901760
        %2227 = vmatmul.mubr.f32.gmra.mxu0 %v2226
        %v2228 = vpop.f32.mrf.mxu0
        %v2229 = vadd.f32 %v2144, %v2228
        %v2230 = vpop.f32.mrf.mxu0
        %v2231 = vadd.f32 %v2146, %v2230
        %2232 = vmatprep.mubr.f32.mxu0 0.0
        %v2233 = vand.u32 %v1659, 4294901760
        %2234 = vmatmul.mubr.f32.gmra.mxu0 %v2233
        %v2235 = vpop.f32.mrf.mxu0
        %v2236 = vadd.f32 %v2151, %v2235
        %v2237 = vpop.f32.mrf.mxu0
        %v2238 = vadd.f32 %v2153, %v2237
        %2239 = vdwg.mxu0
        %2240 = vmatprep.subr.mxu0 0.0
        %2241 = vmatpush1.msra.mxu0 0.0
        %2242 = vmatprep.subr.mxu0 0.0
        %2243 = vmatpush1.msra.mxu0 0.0
        %2244 = vmatprep.subr.mxu0 0.0
        %2245 = vmatpush1.msra.mxu0 0.0
        %2246 = vmatprep.subr.mxu0 0.0
        %2247 = vmatpush1.msra.mxu0 0.0
        %2248 = vmatprep.subr.mxu0 0.0
        %2249 = vmatpush1.msra.mxu0 0.0
        %2250 = vmatprep.subr.mxu0 0.0
        %2251 = vmatpush1.msra.mxu0 0.0
        %2252 = vmatprep.subr.mxu0 0.0
        %2253 = vmatpush1.msra.mxu0 0.0
        %2254 = vmatprep.subr.mxu0 0.0
        %2255 = vmatpush1.msra.mxu0 0.0
        %2256 = vmatprep.subr.mxu0 0.0
        %2257 = vmatpush1.msra.mxu0 0.0
        %2258 = vmatprep.subr.mxu0 0.0
        %2259 = vmatpush1.msra.mxu0 0.0
        %2260 = vmatprep.subr.mxu0 0.0
        %2261 = vmatpush1.msra.mxu0 0.0
        %2262 = vmatprep.subr.mxu0 0.0
        %2263 = vmatpush1.msra.mxu0 0.0
        %2264 = vmatprep.subr.mxu0 0.0
        %2265 = vmatpush1.msra.mxu0 0.0
        %v2266 = vand.u32 %v1672, 4294901760
        %2267 = vmatprep.subr.mxu0 %v2266
        %v2268 = vand.u32 %v1669, 4294901760
        %2269 = vmatpush1.msra.mxu0 %v2268
        %v2270 = vand.u32 %v1637, 4294901760
        %2271 = vmatprep.subr.mxu0 %v2270
        %v2272 = vand.u32 %v1636, 4294901760
        %2273 = vmatpush1.msra.mxu0 %v2272
        %v2274 = vand.u32 %v1633, 4294901760
        %2275 = vmatprep.subr.mxu0 %v2274
        %v2276 = vand.u32 %v1632, 4294901760
        %2277 = vmatpush1.msra.mxu0 %v2276
        %2278 = vmatprep.subr.mxu0 0.0
        %2279 = vmatpush2.msra.mxu0 0.0
        %2280 = vmatprep.subr.mxu0 0.0
        %2281 = vmatpush2.msra.mxu0 0.0
        %2282 = vmatprep.subr.mxu0 0.0
        %2283 = vmatpush2.msra.mxu0 0.0
        %2284 = vmatprep.subr.mxu0 0.0
        %2285 = vmatpush2.msra.mxu0 0.0
        %2286 = vmatprep.subr.mxu0 0.0
        %2287 = vmatpush2.msra.mxu0 0.0
        %2288 = vmatprep.subr.mxu0 0.0
        %2289 = vmatpush2.msra.mxu0 0.0
        %2290 = vmatprep.subr.mxu0 0.0
        %2291 = vmatpush2.msra.mxu0 0.0
        %2292 = vmatprep.subr.mxu0 0.0
        %2293 = vmatpush2.msra.mxu0 0.0
        %2294 = vmatprep.subr.mxu0 0.0
        %2295 = vmatpush2.msra.mxu0 0.0
        %2296 = vmatprep.subr.mxu0 0.0
        %2297 = vmatpush2.msra.mxu0 0.0
        %2298 = vmatprep.subr.mxu0 0.0
        %2299 = vmatpush2.msra.mxu0 0.0
        %2300 = vmatprep.subr.mxu0 0.0
        %2301 = vmatpush2.msra.mxu0 0.0
        %2302 = vmatprep.subr.mxu0 0.0
        %2303 = vmatpush2.msra.mxu0 0.0
        %2304 = vmatprep.subr.mxu0 0.0
        %2305 = vmatpush2.msra.mxu0 0.0
        %2306 = vmatprep.subr.mxu0 0.0
        %2307 = vmatpush2.msra.mxu0 0.0
        %2308 = vmatprep.subr.mxu0 0.0
        %2309 = vmatpush2.msra.mxu0 0.0
        %2310 = vmatprep.mubr.f32.mxu0 0.0
        %v2311 = vand.u32 %v1656, 4294901760
        %v2312 = vsub.f32 %v1656, %v2311
        %v2313 = vand.u32 %v2312, 4294901760
        %v2314 = vsub.f32 %v2312, %v2313
        %v2315 = vand.u32 %v2314, 4294901760
        %2316 = vmatmul.mubr.f32.gmra.mxu0 %v2315
        %v2317 = vpop.f32.mrf.mxu0
        %v2318 = vadd.f32 %v1647, %v2317
        %v2319 = vpop.f32.mrf.mxu0
        %v2320 = vadd.f32 %v1647, %v2319
        %2321 = vmatprep.mubr.f32.mxu0 0.0
        %v2322 = vand.u32 %v1659, 4294901760
        %v2323 = vsub.f32 %v1659, %v2322
        %v2324 = vand.u32 %v2323, 4294901760
        %v2325 = vsub.f32 %v2323, %v2324
        %v2326 = vand.u32 %v2325, 4294901760
        %2327 = vmatmul.mubr.f32.gmra.mxu0 %v2326
        %v2328 = vpop.f32.mrf.mxu0
        %v2329 = vadd.f32 %v1652, %v2328
        %v2330 = vpop.f32.mrf.mxu0
        %v2331 = vadd.f32 %v1652, %v2330
        %2332 = vdwg.mxu0
        %2333 = vmatprep.subr.mxu0 0.0
        %2334 = vmatpush1.msra.mxu0 0.0
        %2335 = vmatprep.subr.mxu0 0.0
        %2336 = vmatpush1.msra.mxu0 0.0
        %2337 = vmatprep.subr.mxu0 0.0
        %2338 = vmatpush1.msra.mxu0 0.0
        %2339 = vmatprep.subr.mxu0 0.0
        %2340 = vmatpush1.msra.mxu0 0.0
        %2341 = vmatprep.subr.mxu0 0.0
        %2342 = vmatpush1.msra.mxu0 0.0
        %2343 = vmatprep.subr.mxu0 0.0
        %2344 = vmatpush1.msra.mxu0 0.0
        %2345 = vmatprep.subr.mxu0 0.0
        %2346 = vmatpush1.msra.mxu0 0.0
        %2347 = vmatprep.subr.mxu0 0.0
        %2348 = vmatpush1.msra.mxu0 0.0
        %2349 = vmatprep.subr.mxu0 0.0
        %2350 = vmatpush1.msra.mxu0 0.0
        %2351 = vmatprep.subr.mxu0 0.0
        %2352 = vmatpush1.msra.mxu0 0.0
        %2353 = vmatprep.subr.mxu0 0.0
        %2354 = vmatpush1.msra.mxu0 0.0
        %2355 = vmatprep.subr.mxu0 0.0
        %2356 = vmatpush1.msra.mxu0 0.0
        %2357 = vmatprep.subr.mxu0 0.0
        %2358 = vmatpush1.msra.mxu0 0.0
        %v2359 = vand.u32 %v1672, 4294901760
        %v2360 = vsub.f32 %v1672, %v2359
        %v2361 = vand.u32 %v2360, 4294901760
        %v2362 = vsub.f32 %v2360, %v2361
        %v2363 = vand.u32 %v2362, 4294901760
        %2364 = vmatprep.subr.mxu0 %v2363
        %v2365 = vand.u32 %v1669, 4294901760
        %v2366 = vsub.f32 %v1669, %v2365
        %v2367 = vand.u32 %v2366, 4294901760
        %v2368 = vsub.f32 %v2366, %v2367
        %v2369 = vand.u32 %v2368, 4294901760
        %2370 = vmatpush1.msra.mxu0 %v2369
        %v2371 = vand.u32 %v1637, 4294901760
        %v2372 = vsub.f32 %v1637, %v2371
        %v2373 = vand.u32 %v2372, 4294901760
        %v2374 = vsub.f32 %v2372, %v2373
        %v2375 = vand.u32 %v2374, 4294901760
        %2376 = vmatprep.subr.mxu0 %v2375
        %v2377 = vand.u32 %v1636, 4294901760
        %v2378 = vsub.f32 %v1636, %v2377
        %v2379 = vand.u32 %v2378, 4294901760
        %v2380 = vsub.f32 %v2378, %v2379
        %v2381 = vand.u32 %v2380, 4294901760
        %2382 = vmatpush1.msra.mxu0 %v2381
        %v2383 = vand.u32 %v1633, 4294901760
        %v2384 = vsub.f32 %v1633, %v2383
        %v2385 = vand.u32 %v2384, 4294901760
        %v2386 = vsub.f32 %v2384, %v2385
        %v2387 = vand.u32 %v2386, 4294901760
        %2388 = vmatprep.subr.mxu0 %v2387
        %v2389 = vand.u32 %v1632, 4294901760
        %v2390 = vsub.f32 %v1632, %v2389
        %v2391 = vand.u32 %v2390, 4294901760
        %v2392 = vsub.f32 %v2390, %v2391
        %v2393 = vand.u32 %v2392, 4294901760
        %2394 = vmatpush1.msra.mxu0 %v2393
        %2395 = vmatprep.subr.mxu0 0.0
        %2396 = vmatpush2.msra.mxu0 0.0
        %2397 = vmatprep.subr.mxu0 0.0
        %2398 = vmatpush2.msra.mxu0 0.0
        %2399 = vmatprep.subr.mxu0 0.0
        %2400 = vmatpush2.msra.mxu0 0.0
        %2401 = vmatprep.subr.mxu0 0.0
        %2402 = vmatpush2.msra.mxu0 0.0
        %2403 = vmatprep.subr.mxu0 0.0
        %2404 = vmatpush2.msra.mxu0 0.0
        %2405 = vmatprep.subr.mxu0 0.0
        %2406 = vmatpush2.msra.mxu0 0.0
        %2407 = vmatprep.subr.mxu0 0.0
        %2408 = vmatpush2.msra.mxu0 0.0
        %2409 = vmatprep.subr.mxu0 0.0
        %2410 = vmatpush2.msra.mxu0 0.0
        %2411 = vmatprep.subr.mxu0 0.0
        %2412 = vmatpush2.msra.mxu0 0.0
        %2413 = vmatprep.subr.mxu0 0.0
        %2414 = vmatpush2.msra.mxu0 0.0
        %2415 = vmatprep.subr.mxu0 0.0
        %2416 = vmatpush2.msra.mxu0 0.0
        %2417 = vmatprep.subr.mxu0 0.0
        %2418 = vmatpush2.msra.mxu0 0.0
        %2419 = vmatprep.subr.mxu0 0.0
        %2420 = vmatpush2.msra.mxu0 0.0
        %2421 = vmatprep.subr.mxu0 0.0
        %2422 = vmatpush2.msra.mxu0 0.0
        %2423 = vmatprep.subr.mxu0 0.0
        %2424 = vmatpush2.msra.mxu0 0.0
        %2425 = vmatprep.subr.mxu0 0.0
        %2426 = vmatpush2.msra.mxu0 0.0
        %2427 = vmatprep.mubr.f32.mxu0 0.0
        %v2428 = vand.u32 %v1656, 4294901760
        %2429 = vmatmul.mubr.f32.gmra.mxu0 %v2428
        %v2430 = vpop.f32.mrf.mxu0
        %v2431 = vadd.f32 %v2318, %v2430
        %v2432 = vpop.f32.mrf.mxu0
        %v2433 = vadd.f32 %v2320, %v2432
        %2434 = vmatprep.mubr.f32.mxu0 0.0
        %v2435 = vand.u32 %v1659, 4294901760
        %2436 = vmatmul.mubr.f32.gmra.mxu0 %v2435
        %v2437 = vpop.f32.mrf.mxu0
        %v2438 = vadd.f32 %v2329, %v2437
        %v2439 = vpop.f32.mrf.mxu0
        %v2440 = vadd.f32 %v2331, %v2439
        %2441 = vdwg.mxu0
        %2442 = vmatprep.subr.mxu0 0.0
        %2443 = vmatpush1.msra.mxu0 0.0
        %2444 = vmatprep.subr.mxu0 0.0
        %2445 = vmatpush1.msra.mxu0 0.0
        %2446 = vmatprep.subr.mxu0 0.0
        %2447 = vmatpush1.msra.mxu0 0.0
        %2448 = vmatprep.subr.mxu0 0.0
        %2449 = vmatpush1.msra.mxu0 0.0
        %2450 = vmatprep.subr.mxu0 0.0
        %2451 = vmatpush1.msra.mxu0 0.0
        %2452 = vmatprep.subr.mxu0 0.0
        %2453 = vmatpush1.msra.mxu0 0.0
        %2454 = vmatprep.subr.mxu0 0.0
        %2455 = vmatpush1.msra.mxu0 0.0
        %2456 = vmatprep.subr.mxu0 0.0
        %2457 = vmatpush1.msra.mxu0 0.0
        %2458 = vmatprep.subr.mxu0 0.0
        %2459 = vmatpush1.msra.mxu0 0.0
        %2460 = vmatprep.subr.mxu0 0.0
        %2461 = vmatpush1.msra.mxu0 0.0
        %2462 = vmatprep.subr.mxu0 0.0
        %2463 = vmatpush1.msra.mxu0 0.0
        %2464 = vmatprep.subr.mxu0 0.0
        %2465 = vmatpush1.msra.mxu0 0.0
        %2466 = vmatprep.subr.mxu0 0.0
        %2467 = vmatpush1.msra.mxu0 0.0
        %v2468 = vand.u32 %v1672, 4294901760
        %v2469 = vsub.f32 %v1672, %v2468
        %2470 = vmatprep.subr.mxu0 %v2469
        %v2471 = vand.u32 %v1669, 4294901760
        %v2472 = vsub.f32 %v1669, %v2471
        %2473 = vmatpush1.msra.mxu0 %v2472
        %v2474 = vand.u32 %v1637, 4294901760
        %v2475 = vsub.f32 %v1637, %v2474
        %2476 = vmatprep.subr.mxu0 %v2475
        %v2477 = vand.u32 %v1636, 4294901760
        %v2478 = vsub.f32 %v1636, %v2477
        %2479 = vmatpush1.msra.mxu0 %v2478
        %v2480 = vand.u32 %v1633, 4294901760
        %v2481 = vsub.f32 %v1633, %v2480
        %2482 = vmatprep.subr.mxu0 %v2481
        %v2483 = vand.u32 %v1632, 4294901760
        %v2484 = vsub.f32 %v1632, %v2483
        %2485 = vmatpush1.msra.mxu0 %v2484
        %2486 = vmatprep.subr.mxu0 0.0
        %2487 = vmatpush2.msra.mxu0 0.0
        %2488 = vmatprep.subr.mxu0 0.0
        %2489 = vmatpush2.msra.mxu0 0.0
        %2490 = vmatprep.subr.mxu0 0.0
        %2491 = vmatpush2.msra.mxu0 0.0
        %2492 = vmatprep.subr.mxu0 0.0
        %2493 = vmatpush2.msra.mxu0 0.0
        %2494 = vmatprep.subr.mxu0 0.0
        %2495 = vmatpush2.msra.mxu0 0.0
        %2496 = vmatprep.subr.mxu0 0.0
        %2497 = vmatpush2.msra.mxu0 0.0
        %2498 = vmatprep.subr.mxu0 0.0
        %2499 = vmatpush2.msra.mxu0 0.0
        %2500 = vmatprep.subr.mxu0 0.0
        %2501 = vmatpush2.msra.mxu0 0.0
        %2502 = vmatprep.subr.mxu0 0.0
        %2503 = vmatpush2.msra.mxu0 0.0
        %2504 = vmatprep.subr.mxu0 0.0
        %2505 = vmatpush2.msra.mxu0 0.0
        %2506 = vmatprep.subr.mxu0 0.0
        %2507 = vmatpush2.msra.mxu0 0.0
        %2508 = vmatprep.subr.mxu0 0.0
        %2509 = vmatpush2.msra.mxu0 0.0
        %2510 = vmatprep.subr.mxu0 0.0
        %2511 = vmatpush2.msra.mxu0 0.0
        %2512 = vmatprep.subr.mxu0 0.0
        %2513 = vmatpush2.msra.mxu0 0.0
        %2514 = vmatprep.subr.mxu0 0.0
        %2515 = vmatpush2.msra.mxu0 0.0
        %2516 = vmatprep.subr.mxu0 0.0
        %2517 = vmatpush2.msra.mxu0 0.0
        %2518 = vmatprep.mubr.f32.mxu0 0.0
        %v2519 = vand.u32 %v1656, 4294901760
        %v2520 = vsub.f32 %v1656, %v2519
        %2521 = vmatmul.mubr.f32.gmra.mxu0 %v2520
        %v2522 = vpop.f32.mrf.mxu0
        %v2523 = vadd.f32 %v2431, %v2522
        %v2524 = vpop.f32.mrf.mxu0
        %v2525 = vadd.f32 %v2433, %v2524
        %2526 = vmatprep.mubr.f32.mxu0 0.0
        %v2527 = vand.u32 %v1659, 4294901760
        %v2528 = vsub.f32 %v1659, %v2527
        %2529 = vmatmul.mubr.f32.gmra.mxu0 %v2528
        %v2530 = vpop.f32.mrf.mxu0
        %v2531 = vadd.f32 %v2438, %v2530
        %v2532 = vpop.f32.mrf.mxu0
        %v2533 = vadd.f32 %v2440, %v2532
        %2534 = vdwg.mxu0
        %2535 = vmatprep.subr.mxu0 0.0
        %2536 = vmatpush1.msra.mxu0 0.0
        %2537 = vmatprep.subr.mxu0 0.0
        %2538 = vmatpush1.msra.mxu0 0.0
        %2539 = vmatprep.subr.mxu0 0.0
        %2540 = vmatpush1.msra.mxu0 0.0
        %2541 = vmatprep.subr.mxu0 0.0
        %2542 = vmatpush1.msra.mxu0 0.0
        %2543 = vmatprep.subr.mxu0 0.0
        %2544 = vmatpush1.msra.mxu0 0.0
        %2545 = vmatprep.subr.mxu0 0.0
        %2546 = vmatpush1.msra.mxu0 0.0
        %2547 = vmatprep.subr.mxu0 0.0
        %2548 = vmatpush1.msra.mxu0 0.0
        %2549 = vmatprep.subr.mxu0 0.0
        %2550 = vmatpush1.msra.mxu0 0.0
        %2551 = vmatprep.subr.mxu0 0.0
        %2552 = vmatpush1.msra.mxu0 0.0
        %2553 = vmatprep.subr.mxu0 0.0
        %2554 = vmatpush1.msra.mxu0 0.0
        %2555 = vmatprep.subr.mxu0 0.0
        %2556 = vmatpush1.msra.mxu0 0.0
        %2557 = vmatprep.subr.mxu0 0.0
        %2558 = vmatpush1.msra.mxu0 0.0
        %2559 = vmatprep.subr.mxu0 0.0
        %2560 = vmatpush1.msra.mxu0 0.0
        %v2561 = vand.u32 %v1672, 4294901760
        %2562 = vmatprep.subr.mxu0 %v2561
        %v2563 = vand.u32 %v1669, 4294901760
        %2564 = vmatpush1.msra.mxu0 %v2563
        %v2565 = vand.u32 %v1637, 4294901760
        %2566 = vmatprep.subr.mxu0 %v2565
        %v2567 = vand.u32 %v1636, 4294901760
        %2568 = vmatpush1.msra.mxu0 %v2567
        %v2569 = vand.u32 %v1633, 4294901760
        %2570 = vmatprep.subr.mxu0 %v2569
        %v2571 = vand.u32 %v1632, 4294901760
        %2572 = vmatpush1.msra.mxu0 %v2571
        %2573 = vmatprep.subr.mxu0 0.0
        %2574 = vmatpush2.msra.mxu0 0.0
        %2575 = vmatprep.subr.mxu0 0.0
        %2576 = vmatpush2.msra.mxu0 0.0
        %2577 = vmatprep.subr.mxu0 0.0
        %2578 = vmatpush2.msra.mxu0 0.0
        %2579 = vmatprep.subr.mxu0 0.0
        %2580 = vmatpush2.msra.mxu0 0.0
        %2581 = vmatprep.subr.mxu0 0.0
        %2582 = vmatpush2.msra.mxu0 0.0
        %2583 = vmatprep.subr.mxu0 0.0
        %2584 = vmatpush2.msra.mxu0 0.0
        %2585 = vmatprep.subr.mxu0 0.0
        %2586 = vmatpush2.msra.mxu0 0.0
        %2587 = vmatprep.subr.mxu0 0.0
        %2588 = vmatpush2.msra.mxu0 0.0
        %2589 = vmatprep.subr.mxu0 0.0
        %2590 = vmatpush2.msra.mxu0 0.0
        %2591 = vmatprep.subr.mxu0 0.0
        %2592 = vmatpush2.msra.mxu0 0.0
        %2593 = vmatprep.subr.mxu0 0.0
        %2594 = vmatpush2.msra.mxu0 0.0
        %2595 = vmatprep.subr.mxu0 0.0
        %2596 = vmatpush2.msra.mxu0 0.0
        %2597 = vmatprep.subr.mxu0 0.0
        %2598 = vmatpush2.msra.mxu0 0.0
        %2599 = vmatprep.subr.mxu0 0.0
        %2600 = vmatpush2.msra.mxu0 0.0
        %2601 = vmatprep.subr.mxu0 0.0
        %2602 = vmatpush2.msra.mxu0 0.0
        %2603 = vmatprep.subr.mxu0 0.0
        %2604 = vmatpush2.msra.mxu0 0.0
        %2605 = vmatprep.mubr.f32.mxu0 0.0
        %v2606 = vand.u32 %v1656, 4294901760
        %v2607 = vsub.f32 %v1656, %v2606
        %v2608 = vand.u32 %v2607, 4294901760
        %2609 = vmatmul.mubr.f32.gmra.mxu0 %v2608
        %v2610 = vpop.f32.mrf.mxu0
        %v2611 = vadd.f32 %v2523, %v2610
        %v2612 = vpop.f32.mrf.mxu0
        %v2613 = vadd.f32 %v2525, %v2612
        %2614 = vmatprep.mubr.f32.mxu0 0.0
        %v2615 = vand.u32 %v1659, 4294901760
        %v2616 = vsub.f32 %v1659, %v2615
        %v2617 = vand.u32 %v2616, 4294901760
        %2618 = vmatmul.mubr.f32.gmra.mxu0 %v2617
        %v2619 = vpop.f32.mrf.mxu0
        %v2620 = vadd.f32 %v2531, %v2619
        %v2621 = vpop.f32.mrf.mxu0
        %v2622 = vadd.f32 %v2533, %v2621
        %2623 = vdwg.mxu0
        %2624 = vmatprep.subr.mxu0 0.0
        %2625 = vmatpush1.msra.mxu0 0.0
        %2626 = vmatprep.subr.mxu0 0.0
        %2627 = vmatpush1.msra.mxu0 0.0
        %2628 = vmatprep.subr.mxu0 0.0
        %2629 = vmatpush1.msra.mxu0 0.0
        %2630 = vmatprep.subr.mxu0 0.0
        %2631 = vmatpush1.msra.mxu0 0.0
        %2632 = vmatprep.subr.mxu0 0.0
        %2633 = vmatpush1.msra.mxu0 0.0
        %2634 = vmatprep.subr.mxu0 0.0
        %2635 = vmatpush1.msra.mxu0 0.0
        %2636 = vmatprep.subr.mxu0 0.0
        %2637 = vmatpush1.msra.mxu0 0.0
        %2638 = vmatprep.subr.mxu0 0.0
        %2639 = vmatpush1.msra.mxu0 0.0
        %2640 = vmatprep.subr.mxu0 0.0
        %2641 = vmatpush1.msra.mxu0 0.0
        %2642 = vmatprep.subr.mxu0 0.0
        %2643 = vmatpush1.msra.mxu0 0.0
        %2644 = vmatprep.subr.mxu0 0.0
        %2645 = vmatpush1.msra.mxu0 0.0
        %2646 = vmatprep.subr.mxu0 0.0
        %2647 = vmatpush1.msra.mxu0 0.0
        %2648 = vmatprep.subr.mxu0 0.0
        %2649 = vmatpush1.msra.mxu0 0.0
        %v2650 = vand.u32 %v1672, 4294901760
        %v2651 = vsub.f32 %v1672, %v2650
        %v2652 = vand.u32 %v2651, 4294901760
        %2653 = vmatprep.subr.mxu0 %v2652
        %v2654 = vand.u32 %v1669, 4294901760
        %v2655 = vsub.f32 %v1669, %v2654
        %v2656 = vand.u32 %v2655, 4294901760
        %2657 = vmatpush1.msra.mxu0 %v2656
        %v2658 = vand.u32 %v1637, 4294901760
        %v2659 = vsub.f32 %v1637, %v2658
        %v2660 = vand.u32 %v2659, 4294901760
        %2661 = vmatprep.subr.mxu0 %v2660
        %v2662 = vand.u32 %v1636, 4294901760
        %v2663 = vsub.f32 %v1636, %v2662
        %v2664 = vand.u32 %v2663, 4294901760
        %2665 = vmatpush1.msra.mxu0 %v2664
        %v2666 = vand.u32 %v1633, 4294901760
        %v2667 = vsub.f32 %v1633, %v2666
        %v2668 = vand.u32 %v2667, 4294901760
        %2669 = vmatprep.subr.mxu0 %v2668
        %v2670 = vand.u32 %v1632, 4294901760
        %v2671 = vsub.f32 %v1632, %v2670
        %v2672 = vand.u32 %v2671, 4294901760
        %2673 = vmatpush1.msra.mxu0 %v2672
        %2674 = vmatprep.subr.mxu0 0.0
        %2675 = vmatpush2.msra.mxu0 0.0
        %2676 = vmatprep.subr.mxu0 0.0
        %2677 = vmatpush2.msra.mxu0 0.0
        %2678 = vmatprep.subr.mxu0 0.0
        %2679 = vmatpush2.msra.mxu0 0.0
        %2680 = vmatprep.subr.mxu0 0.0
        %2681 = vmatpush2.msra.mxu0 0.0
        %2682 = vmatprep.subr.mxu0 0.0
        %2683 = vmatpush2.msra.mxu0 0.0
        %2684 = vmatprep.subr.mxu0 0.0
        %2685 = vmatpush2.msra.mxu0 0.0
        %2686 = vmatprep.subr.mxu0 0.0
        %2687 = vmatpush2.msra.mxu0 0.0
        %2688 = vmatprep.subr.mxu0 0.0
        %2689 = vmatpush2.msra.mxu0 0.0
        %2690 = vmatprep.subr.mxu0 0.0
        %2691 = vmatpush2.msra.mxu0 0.0
        %2692 = vmatprep.subr.mxu0 0.0
        %2693 = vmatpush2.msra.mxu0 0.0
        %2694 = vmatprep.subr.mxu0 0.0
        %2695 = vmatpush2.msra.mxu0 0.0
        %2696 = vmatprep.subr.mxu0 0.0
        %2697 = vmatpush2.msra.mxu0 0.0
        %2698 = vmatprep.subr.mxu0 0.0
        %2699 = vmatpush2.msra.mxu0 0.0
        %2700 = vmatprep.subr.mxu0 0.0
        %2701 = vmatpush2.msra.mxu0 0.0
        %2702 = vmatprep.subr.mxu0 0.0
        %2703 = vmatpush2.msra.mxu0 0.0
        %2704 = vmatprep.subr.mxu0 0.0
        %2705 = vmatpush2.msra.mxu0 0.0
        %2706 = vmatprep.mubr.f32.mxu0 0.0
        %v2707 = vand.u32 %v1656, 4294901760
        %2708 = vmatmul.mubr.f32.gmra.mxu0 %v2707
        %v2709 = vpop.f32.mrf.mxu0
        %v2710 = vadd.f32 %v2611, %v2709
        %v2711 = vpop.f32.mrf.mxu0
        %v2712 = vadd.f32 %v2613, %v2711
        %2713 = vmatprep.mubr.f32.mxu0 0.0
        %v2714 = vand.u32 %v1659, 4294901760
        %2715 = vmatmul.mubr.f32.gmra.mxu0 %v2714
        %v2716 = vpop.f32.mrf.mxu0
        %v2717 = vadd.f32 %v2620, %v2716
        %v2718 = vpop.f32.mrf.mxu0
        %v2719 = vadd.f32 %v2622, %v2718
        %2720 = vdwg.mxu0
        %2721 = vmatprep.subr.mxu0 0.0
        %2722 = vmatpush1.msra.mxu0 0.0
        %2723 = vmatprep.subr.mxu0 0.0
        %2724 = vmatpush1.msra.mxu0 0.0
        %2725 = vmatprep.subr.mxu0 0.0
        %2726 = vmatpush1.msra.mxu0 0.0
        %2727 = vmatprep.subr.mxu0 0.0
        %2728 = vmatpush1.msra.mxu0 0.0
        %2729 = vmatprep.subr.mxu0 0.0
        %2730 = vmatpush1.msra.mxu0 0.0
        %2731 = vmatprep.subr.mxu0 0.0
        %2732 = vmatpush1.msra.mxu0 0.0
        %2733 = vmatprep.subr.mxu0 0.0
        %2734 = vmatpush1.msra.mxu0 0.0
        %2735 = vmatprep.subr.mxu0 0.0
        %2736 = vmatpush1.msra.mxu0 0.0
        %2737 = vmatprep.subr.mxu0 0.0
        %2738 = vmatpush1.msra.mxu0 0.0
        %2739 = vmatprep.subr.mxu0 0.0
        %2740 = vmatpush1.msra.mxu0 0.0
        %2741 = vmatprep.subr.mxu0 0.0
        %2742 = vmatpush1.msra.mxu0 0.0
        %2743 = vmatprep.subr.mxu0 0.0
        %2744 = vmatpush1.msra.mxu0 0.0
        %2745 = vmatprep.subr.mxu0 0.0
        %2746 = vmatpush1.msra.mxu0 0.0
        %v2747 = vand.u32 %v1672, 4294901760
        %2748 = vmatprep.subr.mxu0 %v2747
        %v2749 = vand.u32 %v1669, 4294901760
        %2750 = vmatpush1.msra.mxu0 %v2749
        %v2751 = vand.u32 %v1637, 4294901760
        %2752 = vmatprep.subr.mxu0 %v2751
        %v2753 = vand.u32 %v1636, 4294901760
        %2754 = vmatpush1.msra.mxu0 %v2753
        %v2755 = vand.u32 %v1633, 4294901760
        %2756 = vmatprep.subr.mxu0 %v2755
        %v2757 = vand.u32 %v1632, 4294901760
        %2758 = vmatpush1.msra.mxu0 %v2757
        %2759 = vmatprep.subr.mxu0 0.0
        %2760 = vmatpush2.msra.mxu0 0.0
        %2761 = vmatprep.subr.mxu0 0.0
        %2762 = vmatpush2.msra.mxu0 0.0
        %2763 = vmatprep.subr.mxu0 0.0
        %2764 = vmatpush2.msra.mxu0 0.0
        %2765 = vmatprep.subr.mxu0 0.0
        %2766 = vmatpush2.msra.mxu0 0.0
        %2767 = vmatprep.subr.mxu0 0.0
        %2768 = vmatpush2.msra.mxu0 0.0
        %2769 = vmatprep.subr.mxu0 0.0
        %2770 = vmatpush2.msra.mxu0 0.0
        %2771 = vmatprep.subr.mxu0 0.0
        %2772 = vmatpush2.msra.mxu0 0.0
        %2773 = vmatprep.subr.mxu0 0.0
        %2774 = vmatpush2.msra.mxu0 0.0
        %2775 = vmatprep.subr.mxu0 0.0
        %2776 = vmatpush2.msra.mxu0 0.0
        %2777 = vmatprep.subr.mxu0 0.0
        %2778 = vmatpush2.msra.mxu0 0.0
        %2779 = vmatprep.subr.mxu0 0.0
        %2780 = vmatpush2.msra.mxu0 0.0
        %2781 = vmatprep.subr.mxu0 0.0
        %2782 = vmatpush2.msra.mxu0 0.0
        %2783 = vmatprep.subr.mxu0 0.0
        %2784 = vmatpush2.msra.mxu0 0.0
        %2785 = vmatprep.subr.mxu0 0.0
        %2786 = vmatpush2.msra.mxu0 0.0
        %2787 = vmatprep.subr.mxu0 0.0
        %2788 = vmatpush2.msra.mxu0 0.0
        %2789 = vmatprep.subr.mxu0 0.0
        %2790 = vmatpush2.msra.mxu0 0.0
        %2791 = vmatprep.mubr.f32.mxu0 0.0
        %v2792 = vand.u32 %v1656, 4294901760
        %2793 = vmatmul.mubr.f32.gmra.mxu0 %v2792
        %v2794 = vpop.f32.mrf.mxu0
        %v2795 = vadd.f32 %v2710, %v2794
        %v2796 = vpop.f32.mrf.mxu0
        %v2797 = vadd.f32 %v2712, %v2796
        %2798 = vmatprep.mubr.f32.mxu0 0.0
        %v2799 = vand.u32 %v1659, 4294901760
        %2800 = vmatmul.mubr.f32.gmra.mxu0 %v2799
        %v2801 = vpop.f32.mrf.mxu0
        %v2802 = vadd.f32 %v2717, %v2801
        %v2803 = vpop.f32.mrf.mxu0
        %v2804 = vadd.f32 %v2719, %v2803
        %2805 = vdwg.mxu0
        %v2806 = vmax.f32 %v2229, 0.0
        %v2807 = vmax.f32 %v2231, 0.0
        %v2808 = vmax.f32 %v2795, 0.0
        %v2809 = vmax.f32 %v2797, 0.0
        %v2810 = vmax.f32 %v2236, 0.0
        %v2811 = vmax.f32 %v2238, 0.0
        %v2812 = vmax.f32 %v2802, 0.0
        %v2813 = vmax.f32 %v2804, 0.0
        %v2814 = vmul.f32 %v2806, %v2806
        %v2815 = vmul.f32 %v2807, %v2807
        %v2816 = vmul.f32 %v2808, %v2808
        %v2817 = vmul.f32 %v2809, %v2809
        %v2818 = vmul.f32 %v2810, %v2810
        %v2819 = vmul.f32 %v2811, %v2811
        %v2820 = vmul.f32 %v2812, %v2812
        %v2821 = vmul.f32 %v2813, %v2813
        %v2822 = vsel %vm1661, %v2818, 0.0
        %v2823 = vadd.f32 %v2814, %v2822
        %v2824 = vrot.slane %v2823, 4
        %v2825 = vadd.f32 %v2823, %v2824
        %v2826 = vrot.slane %v2825, 2
        %v2827 = vadd.f32 %v2825, %v2826
        %v2828 = vrot.slane %v2827, 1
        %v2829 = vadd.f32 %v2827, %v2828
        %v2830 = vsel %vm1661, %v2819, 0.0
        %v2831 = vadd.f32 %v2815, %v2830
        %v2832 = vrot.slane %v2831, 4
        %v2833 = vadd.f32 %v2831, %v2832
        %v2834 = vrot.slane %v2833, 2
        %v2835 = vadd.f32 %v2833, %v2834
        %v2836 = vrot.slane %v2835, 1
        %v2837 = vadd.f32 %v2835, %v2836
        %v2838 = vsel %vm1661, %v2820, 0.0
        %v2839 = vadd.f32 %v2816, %v2838
        %v2840 = vrot.slane %v2839, 4
        %v2841 = vadd.f32 %v2839, %v2840
        %v2842 = vrot.slane %v2841, 2
        %v2843 = vadd.f32 %v2841, %v2842
        %v2844 = vrot.slane %v2843, 1
        %v2845 = vadd.f32 %v2843, %v2844
        %v2846 = vsel %vm1661, %v2821, 0.0
        %v2847 = vadd.f32 %v2817, %v2846
        %v2848 = vrot.slane %v2847, 4
        %v2849 = vadd.f32 %v2847, %v2848
        %v2850 = vrot.slane %v2849, 2
        %v2851 = vadd.f32 %v2849, %v2850
        %v2852 = vrot.slane %v2851, 1
        %v2853 = vadd.f32 %v2851, %v2852
        %v2854 = vmax.f32 %v2829, 1e-24
        %v2855 = vmax.f32 %v2837, 1e-24
        %v2856 = vmax.f32 %v2845, 1e-24
        %v2857 = vmax.f32 %v2853, 1e-24
        %v2858 = vrsqrt.pop %v2854
        %v2859 = vrsqrt.pop %v2855
        %v2860 = vrsqrt.pop %v2856
        %v2861 = vrsqrt.pop %v2857
        %v2862 = vmul.f32 %v2806, %v2858
        %v2863 = vmul.f32 %v2807, %v2859
        %v2864 = vmul.f32 %v2808, %v2860
        %v2865 = vmul.f32 %v2809, %v2861
        %v2866 = vmul.f32 %v2810, %v2858
        %v2867 = vmul.f32 %v2811, %v2859
        %v2868 = vmul.f32 %v2812, %v2860
        %v2869 = vmul.f32 %v2813, %v2861
        %2870 = vst [vmem:[%s228] sm:$0xff] %v2862
        %2871 = vst [vmem:[%s228 + $0x8] sm:$0xff] %v2863
        %2872 = vst [vmem:[%s228 + $0x10] sm:$0xff] %v2864
        %2873 = vst [vmem:[%s228 + $0x18] sm:$0xff] %v2865
        %2874 = vst [vmem:[%s228 + $0x20] sm:$0xf] %v2866
        %2875 = vst [vmem:[%s228 + $0x28] sm:$0xf] %v2867
        %2876 = vst [vmem:[%s228 + $0x30] sm:$0xf] %v2868
        %2877 = vst [vmem:[%s228 + $0x38] sm:$0xf] %v2869
        %s2878 = sand.u32 %s119, 1
        %s2879 = scalar_lea.sflag [#allocation5], %s2878
        %s2880 = sand.u32 %s119, 1
        %s2881 = smul.addr %s2880, 64
        %s2882 = scalar_lea.vmem [#allocation8], %s2881
        // Predicated region
        $region45: #{tpu_custom_call.1} parent=35 // pred_check
          %p2883 = pneg %p129
        $region46: #{tpu_custom_call.1} parent=35 // pred_check_branch
          %2885 = sbr.rel (%p2883) target = $region48
        $region47: #{tpu_custom_call.1} parent=35 // pred_region
          %s2886 = smul.u32 4, %s22
          %s2888 = ssub.s32 1024, 1024
          %2889 = vsyncadd %s2879, %s2888
          %s2890 = smul.addr %s2886, 128
          %s2891 = scalar_lea.hbm %s4, %s2890
          %s2892 = sshll.u32 %s2882, 4
          %s2893 = int_to_ptr.vmem [resolvable:$true] %s2892
          %2898 = dma.vmem_to_hbm [thread:$0]  %s2893, 1024, %s2891, %s2879, 512, 1024, 32
        $region48: #{tpu_custom_call.1} parent=35 // pred_fallthru
          _
      $region36: #{tpu_custom_call.1} parent=5 // pred_fallthru
        _
      %p2899 = scmp.le.s32.totalorder 2, %s17
      // Predicated region
      $region49: #{tpu_custom_call.1} parent=5 // pred_check
        %p2900 = pneg %p2899
      $region50: #{tpu_custom_call.1} parent=5 // pred_check_branch
        %2902 = sbr.rel (%p2900) target = $region52
      $region51: #{tpu_custom_call.1} parent=5 // pred_region
        %s2903 = ssub.s32 %s17, 2
        // Predicated region
        $region53: #{tpu_custom_call.1} parent=51 // pred_check
          %p2904 = pneg %p135
        $region54: #{tpu_custom_call.1} parent=51 // pred_check_branch
          %2906 = sbr.rel (%p2904) target = $region56
        $region55: #{tpu_custom_call.1} parent=51 // pred_region
          %s2907 = sand.u32 %s120, 1
          %s2908 = scalar_lea.sflag [#allocation5], %s2907
          %s2909 = sand.u32 %s120, 1
          %s2910 = smul.addr %s2909, 64
          %s2911 = scalar_lea.vmem [#allocation8], %s2910
          %2912 = dma.done %s2908, 1024
        $region56: #{tpu_custom_call.1} parent=51 // pred_fallthru
          _
      $region52: #{tpu_custom_call.1} parent=5 // pred_fallthru
        _
    $region6: #{tpu_custom_call.1} parent=1 // loop_footer
      %s21 = sadd.s32 1, %s17
    $region7: #{tpu_custom_call.1} parent=1 // loop_footer_branch
      %16 = sbr.rel target = $region3
    $region8: #{tpu_custom_call.1} parent=1 // loop_exit
      _
    %2913 = vsyncpa [#allocation4], 1
    %s2914 = scalar_lea.sflag [#allocation4], 1
    %2915 = vsyncpa %s2914, 1
    %2916 = vsyncpa [#allocation7], 1
    %2917 = vsyncpa [#allocation5], 1
    %s2918 = scalar_lea.sflag [#allocation5], 1
    %2919 = vsyncpa %s2918, 1

</llo_original>
